<compile_context>
chip_gen: v5e
topology: v5e:2x2
jax: 0.10.0
libtpu: 0.0.40
codegen_flags: <defaults>
</compile_context>

<pallas_src>
import math

import jax
import jax.numpy as jnp
from jax.experimental import pallas as pl
from jax.experimental.pallas import tpu as pltpu  # noqa: F401  (TPU backend assumed)

# Small synthetic DeBERTa-like config.
B, S, H = 2, 8, 32          # batch, seq, hidden
BS = B * S
NH, HD = 4, 8               # heads, head dim
FFN = 64                    # intermediate size
VOCAB = 128
NUM_LABELS = 1              # reward model -> single scalar logit
N_LAYERS = 2
LN_EPS = 1e-7
NEG_INF = -1e9


def _layer_norm(x, g, b, eps=LN_EPS):
    # statistics kept in f32 (inputs are f32 here)
    mu = jnp.mean(x, axis=-1, keepdims=True)
    var = jnp.mean(jnp.square(x - mu), axis=-1, keepdims=True)
    return (x - mu) * jax.lax.rsqrt(var + eps) * g + b


def _softmax(s):
    # f32 stable softmax; denominator reciprocal on the EUP (free slot)
    s = s - jnp.max(s, axis=-1, keepdims=True)
    p = jnp.exp(s)
    return p * pl.reciprocal(jnp.sum(p, axis=-1, keepdims=True), approx=True)


# ---------------------------------------------------------------------------
# Fused forward kernel: embeddings -> encoder layers -> pooler -> classifier
# ---------------------------------------------------------------------------
def reward_model_kernel(ids_ref, bias_ref,
                        emb_ref, embg_ref, embb_ref,
                        wqkv_ref, bqkv_ref, wo_ref, bo_ref, ln1g_ref, ln1b_ref,
                        w1_ref, b1_ref, w2_ref, b2_ref, ln2g_ref, ln2b_ref,
                        pw_ref, pb_ref, cw_ref, cb_ref,
                        out_ref):
    # --- embeddings: one-hot(ids) @ table  (gather expressed as MXU matmul) ---
    ids = ids_ref[...]                                            # (BS, 1) int32
    cols = jax.lax.broadcasted_iota(jnp.int32, (BS, VOCAB), 1)
    one_hot = jnp.where(ids == cols, 1.0, 0.0).astype(jnp.bfloat16)
    x = jnp.dot(one_hot, emb_ref[...],
                preferred_element_type=jnp.float32)               # (BS, H) f32
    x = _layer_norm(x, embg_ref[...], embb_ref[...])

    bias = bias_ref[...]                                          # (BS, BS) f32
    scale = 1.0 / math.sqrt(HD)

    # TODO(synk): real DeBERTa uses disentangled (content + relative position)
    # attention; vanilla scaled dot-product attention is implemented here.
    for l in range(N_LAYERS):                # static unroll, weights stacked [L,...]
        # fused QKV projection: bf16 operands, f32 accumulation
        qkv = jnp.dot(x.astype(jnp.bfloat16), wqkv_ref[l],
                      preferred_element_type=jnp.float32) + bqkv_ref[l]  # (BS, 3H)
        q = qkv[:, 0 * H:1 * H].astype(jnp.bfloat16)
        k = qkv[:, 1 * H:2 * H].astype(jnp.bfloat16)
        v = qkv[:, 2 * H:3 * H].astype(jnp.bfloat16)

        ctx_heads = []
        for h in range(NH):                  # static head loop, tiny 2-D tiles
            qh = q[:, h * HD:(h + 1) * HD]
            kh = k[:, h * HD:(h + 1) * HD]
            vh = v[:, h * HD:(h + 1) * HD]
            # whole-batch scores q @ k^T (NT matmul, no explicit transpose);
            # cross-sequence and padded-key terms are killed by `bias`.
            s = jax.lax.dot_general(qh, kh, (((1,), (1,)), ((), ())),
                                    preferred_element_type=jnp.float32)  # (BS, BS)
            p = _softmax(s * scale + bias)
            ctx_heads.append(jnp.dot(p.astype(jnp.bfloat16), vh,
                                     preferred_element_type=jnp.float32))
        ctx = jnp.concatenate(ctx_heads, axis=-1)                 # (BS, H) f32

        attn_out = jnp.dot(ctx.astype(jnp.bfloat16), wo_ref[l],
                           preferred_element_type=jnp.float32) + bo_ref[l]
        x = _layer_norm(x + attn_out, ln1g_ref[l], ln1b_ref[l])

        # TODO(synk): HF DeBERTa uses exact (erf) GELU; tanh approximation used.
        hmid = jax.nn.gelu(jnp.dot(x.astype(jnp.bfloat16), w1_ref[l],
                                   preferred_element_type=jnp.float32) + b1_ref[l])
        ffn_out = jnp.dot(hmid.astype(jnp.bfloat16), w2_ref[l],
                          preferred_element_type=jnp.float32) + b2_ref[l]
        x = _layer_norm(x + ffn_out, ln2g_ref[l], ln2b_ref[l])

    # --- ContextPooler: first token of each sequence, dense + tanh (eval mode,
    #     dropout omitted) ------------------------------------------------------
    cls_rows = jnp.concatenate([x[b * S:b * S + 1, :] for b in range(B)], axis=0)
    pooled = jnp.tanh(jnp.dot(cls_rows.astype(jnp.bfloat16), pw_ref[...],
                              preferred_element_type=jnp.float32) + pb_ref[...])

    # --- classifier head (`score()`): NUM_LABELS == 1, so use a VPU multiply +
    #     lane reduction instead of a lane-sparse (H,1) MXU matmul --------------
    logits = jnp.sum(pooled * cw_ref[...], axis=-1, keepdims=True) + cb_ref[...]
    out_ref[...] = logits.astype(out_ref.dtype)


# ---------------------------------------------------------------------------
# Wrapper
# ---------------------------------------------------------------------------
def forward(params, input_ids, attention_mask=None):
    """Equivalent of PPOCompatibleRewardModel.forward -> reward logits (B, 1)."""
    # TODO(synk): Qwen-token -> text -> DeBERTa re-tokenization is host-side
    # string processing (tokenizer.decode / tokenizer()) with no Pallas
    # equivalent; the kernel consumes DeBERTa token ids directly.
    if attention_mask is None:
        attention_mask = jnp.ones_like(input_ids)

    ids2 = input_ids.reshape(BS, 1).astype(jnp.int32)

    # Additive attention bias (BS, BS): block-diagonal per sequence + key-padding
    # mask. This lets the kernel run attention over the whole batch at once.
    batch_id = jnp.repeat(jnp.arange(B, dtype=jnp.int32), S)      # (BS,)
    same_seq = batch_id[:, None] == batch_id[None, :]
    key_ok = (attention_mask.reshape(BS) > 0)[None, :]
    attn_bias = jnp.where(same_seq & key_ok, 0.0, NEG_INF).astype(jnp.float32)

    # Single fused pallas_call; no grid (whole problem fits in VMEM), full-array
    # blocks by default.
    return pl.pallas_call(
        reward_model_kernel,
        out_shape=jax.ShapeDtypeStruct((B, NUM_LABELS), jnp.float32),
    )(ids2, attn_bias,
      params["word_emb"], params["emb_ln_g"], params["emb_ln_b"],
      params["wqkv"], params["bqkv"], params["wo"], params["bo"],
      params["ln1_g"], params["ln1_b"],
      params["w1"], params["b1"], params["w2"], params["b2"],
      params["ln2_g"], params["ln2_b"],
      params["pool_w"], params["pool_b"], params["cls_w"], params["cls_b"])


# ---------------------------------------------------------------------------
# Deterministic synthetic parameters (matmul weights stored bf16, stored
# [in, out] so the kernel computes x @ W; biases / LN params in f32).
# ---------------------------------------------------------------------------
def init_params(key):
    def dense(k, *shape):
        return jax.random.normal(k, shape, jnp.float32) * 0.02

    ks = iter(jax.random.split(key, 16))
    return {
        "word_emb": dense(next(ks), VOCAB, H).astype(jnp.bfloat16),
        "emb_ln_g": jnp.ones((1, H), jnp.float32),
        "emb_ln_b": jnp.zeros((1, H), jnp.float32),
        # per-layer weights stacked along a leading [L, ...] axis
        "wqkv": dense(next(ks), N_LAYERS, H, 3 * H).astype(jnp.bfloat16),
        "bqkv": jnp.zeros((N_LAYERS, 1, 3 * H), jnp.float32),
        "wo": dense(next(ks), N_LAYERS, H, H).astype(jnp.bfloat16),
        "bo": jnp.zeros((N_LAYERS, 1, H), jnp.float32),
        "ln1_g": jnp.ones((N_LAYERS, 1, H), jnp.float32),
        "ln1_b": jnp.zeros((N_LAYERS, 1, H), jnp.float32),
        "w1": dense(next(ks), N_LAYERS, H, FFN).astype(jnp.bfloat16),
        "b1": jnp.zeros((N_LAYERS, 1, FFN), jnp.float32),
        "w2": dense(next(ks), N_LAYERS, FFN, H).astype(jnp.bfloat16),
        "b2": jnp.zeros((N_LAYERS, 1, H), jnp.float32),
        "ln2_g": jnp.ones((N_LAYERS, 1, H), jnp.float32),
        "ln2_b": jnp.zeros((N_LAYERS, 1, H), jnp.float32),
        "pool_w": dense(next(ks), H, H).astype(jnp.bfloat16),
        "pool_b": jnp.zeros((1, H), jnp.float32),
        "cls_w": dense(next(ks), NUM_LABELS, H),            # (out, in), f32 (VPU path)
        "cls_b": jnp.zeros((1, NUM_LABELS), jnp.float32),
    }


if __name__ == "__main__":
    key = jax.random.PRNGKey(0)
    pkey, ikey = jax.random.split(key)
    params = init_params(pkey)

    input_ids = jax.random.randint(ikey, (B, S), 0, VOCAB, dtype=jnp.int32)
    # second sequence has 2 padded positions to exercise the attention mask
    attention_mask = jnp.array([[1] * S, [1] * (S - 2) + [0] * 2], dtype=jnp.int32)

    logits = jax.jit(forward)(params, input_ids, attention_mask)
    logits = jax.block_until_ready(logits)
    assert logits.shape == (B, NUM_LABELS)
    assert bool(jnp.all(jnp.isfinite(logits)))
    print("KERNEL_OK")
</pallas_src>

<mosaic_0001>
module attributes {stable_mosaic.version = 11 : i64} {
  func.func @reward_model_kernel(%arg0: memref<16x1xi32, #tpu.memory_space<vmem>>, %arg1: memref<16x16xf32, #tpu.memory_space<vmem>>, %arg2: memref<128x32xbf16, #tpu.memory_space<vmem>>, %arg3: memref<1x32xf32, #tpu.memory_space<vmem>>, %arg4: memref<1x32xf32, #tpu.memory_space<vmem>>, %arg5: memref<2x32x96xbf16, #tpu.memory_space<vmem>>, %arg6: memref<2x1x96xf32, #tpu.memory_space<vmem>>, %arg7: memref<2x32x32xbf16, #tpu.memory_space<vmem>>, %arg8: memref<2x1x32xf32, #tpu.memory_space<vmem>>, %arg9: memref<2x1x32xf32, #tpu.memory_space<vmem>>, %arg10: memref<2x1x32xf32, #tpu.memory_space<vmem>>, %arg11: memref<2x32x64xbf16, #tpu.memory_space<vmem>>, %arg12: memref<2x1x64xf32, #tpu.memory_space<vmem>>, %arg13: memref<2x64x32xbf16, #tpu.memory_space<vmem>>, %arg14: memref<2x1x32xf32, #tpu.memory_space<vmem>>, %arg15: memref<2x1x32xf32, #tpu.memory_space<vmem>>, %arg16: memref<2x1x32xf32, #tpu.memory_space<vmem>>, %arg17: memref<32x32xbf16, #tpu.memory_space<vmem>>, %arg18: memref<1x32xf32, #tpu.memory_space<vmem>>, %arg19: memref<1x32xf32, #tpu.memory_space<vmem>>, %arg20: memref<1x1xf32, #tpu.memory_space<vmem>>, %arg21: memref<2x1xf32, #tpu.memory_space<vmem>>) attributes {dimension_semantics = [], scalar_prefetch = 0 : i64, scratch_operands = 0 : i64, tpu.core_type = #tpu.core_type<tc>} {
    %c0 = arith.constant 0 : index
    %c0_0 = arith.constant 0 : index
    %0 = vector.load %arg0[%c0, %c0_0] : memref<16x1xi32, #tpu.memory_space<vmem>>, vector<16x1xi32>
    %1 = tpu.iota {dimensions = array<i32: 1>} : vector<16x128xi32>
    %2 = vector.broadcast %0 : vector<16x1xi32> to vector<16x128xi32>
    %3 = arith.cmpi eq, %2, %1 : vector<16x128xi32>
    %cst = arith.constant 1.000000e+00 : f32
    %cst_1 = arith.constant 0.000000e+00 : f32
    %4 = vector.broadcast %cst : f32 to vector<16x128xf32>
    %5 = vector.broadcast %cst_1 : f32 to vector<16x128xf32>
    %6 = arith.select %3, %4, %5 : vector<16x128xi1>, vector<16x128xf32>
    %7 = arith.truncf %6 : vector<16x128xf32> to vector<16x128xbf16>
    %c0_2 = arith.constant 0 : index
    %c0_3 = arith.constant 0 : index
    %8 = vector.load %arg2[%c0_2, %c0_3] : memref<128x32xbf16, #tpu.memory_space<vmem>>, vector<128x32xbf16>
    %cst_4 = arith.constant dense<0.000000e+00> : vector<16x32xf32>
    %9 = tpu.matmul %7, %8, %cst_4 {dimension_numbers = #tpu.dot_dimension_numbers<[1], [0], [0], [1], [0, 0, 1, 1], [], []>} : vector<16x128xbf16>, vector<128x32xbf16>, vector<16x32xf32> -> vector<16x32xf32>
    %c0_5 = arith.constant 0 : index
    %c0_6 = arith.constant 0 : index
    %10 = vector.load %arg3[%c0_5, %c0_6] : memref<1x32xf32, #tpu.memory_space<vmem>>, vector<1x32xf32>
    %c0_7 = arith.constant 0 : index
    %c0_8 = arith.constant 0 : index
    %11 = vector.load %arg4[%c0_7, %c0_8] : memref<1x32xf32, #tpu.memory_space<vmem>>, vector<1x32xf32>
    %cst_9 = arith.constant dense<0.000000e+00> : vector<16xf32>
    %12 = vector.multi_reduction <add>, %9, %cst_9 [1] : vector<16x32xf32> to vector<16xf32>
    %13 = vector.shape_cast %12 : vector<16xf32> to vector<16x1xf32>
    %cst_10 = arith.constant 3.200000e+01 : f32
    %14 = vector.broadcast %cst_10 : f32 to vector<16x1xf32>
    %15 = arith.divf %13, %14 : vector<16x1xf32>
    %16 = vector.broadcast %15 : vector<16x1xf32> to vector<16x32xf32>
    %17 = arith.subf %9, %16 : vector<16x32xf32>
    %18 = arith.mulf %17, %17 : vector<16x32xf32>
    %cst_11 = arith.constant dense<0.000000e+00> : vector<16xf32>
    %19 = vector.multi_reduction <add>, %18, %cst_11 [1] : vector<16x32xf32> to vector<16xf32>
    %20 = vector.shape_cast %19 : vector<16xf32> to vector<16x1xf32>
    %cst_12 = arith.constant 3.200000e+01 : f32
    %21 = vector.broadcast %cst_12 : f32 to vector<16x1xf32>
    %22 = arith.divf %20, %21 : vector<16x1xf32>
    %23 = vector.broadcast %15 : vector<16x1xf32> to vector<16x32xf32>
    %24 = arith.subf %9, %23 : vector<16x32xf32>
    %cst_13 = arith.constant 1.000000e-07 : f32
    %25 = vector.broadcast %cst_13 : f32 to vector<16x1xf32>
    %26 = arith.addf %22, %25 : vector<16x1xf32>
    %27 = math.rsqrt %26 : vector<16x1xf32>
    %28 = vector.broadcast %27 : vector<16x1xf32> to vector<16x32xf32>
    %29 = arith.mulf %24, %28 : vector<16x32xf32>
    %30 = vector.broadcast %10 : vector<1x32xf32> to vector<16x32xf32>
    %31 = arith.mulf %29, %30 : vector<16x32xf32>
    %32 = vector.broadcast %11 : vector<1x32xf32> to vector<16x32xf32>
    %33 = arith.addf %31, %32 : vector<16x32xf32>
    %c0_14 = arith.constant 0 : index
    %c0_15 = arith.constant 0 : index
    %34 = vector.load %arg1[%c0_14, %c0_15] : memref<16x16xf32, #tpu.memory_space<vmem>>, vector<16x16xf32>
    %35 = arith.truncf %33 : vector<16x32xf32> to vector<16x32xbf16>
    %c0_16 = arith.constant 0 : index
    %c0_17 = arith.constant 0 : index
    %c0_18 = arith.constant 0 : index
    %36 = vector.load %arg5[%c0_16, %c0_17, %c0_18] : memref<2x32x96xbf16, #tpu.memory_space<vmem>>, vector<1x32x96xbf16>
    %37 = vector.shape_cast %36 : vector<1x32x96xbf16> to vector<32x96xbf16>
    %cst_19 = arith.constant dense<0.000000e+00> : vector<16x96xf32>
    %38 = tpu.matmul %35, %37, %cst_19 {dimension_numbers = #tpu.dot_dimension_numbers<[1], [0], [0], [1], [0, 0, 1, 1], [], []>} : vector<16x32xbf16>, vector<32x96xbf16>, vector<16x96xf32> -> vector<16x96xf32>
    %c0_20 = arith.constant 0 : index
    %c0_21 = arith.constant 0 : index
    %c0_22 = arith.constant 0 : index
    %39 = vector.load %arg6[%c0_20, %c0_21, %c0_22] : memref<2x1x96xf32, #tpu.memory_space<vmem>>, vector<1x1x96xf32>
    %40 = vector.shape_cast %39 : vector<1x1x96xf32> to vector<1x96xf32>
    %41 = vector.broadcast %40 : vector<1x96xf32> to vector<16x96xf32>
    %42 = arith.addf %38, %41 : vector<16x96xf32>
    %43 = vector.extract_strided_slice %42 {offsets = [0, 0], sizes = [16, 32], strides = [1, 1]} : vector<16x96xf32> to vector<16x32xf32>
    %44 = arith.truncf %43 : vector<16x32xf32> to vector<16x32xbf16>
    %45 = vector.extract_strided_slice %42 {offsets = [0, 32], sizes = [16, 32], strides = [1, 1]} : vector<16x96xf32> to vector<16x32xf32>
    %46 = arith.truncf %45 : vector<16x32xf32> to vector<16x32xbf16>
    %47 = vector.extract_strided_slice %42 {offsets = [0, 64], sizes = [16, 32], strides = [1, 1]} : vector<16x96xf32> to vector<16x32xf32>
    %48 = arith.truncf %47 : vector<16x32xf32> to vector<16x32xbf16>
    %49 = vector.extract_strided_slice %44 {offsets = [0, 0], sizes = [16, 8], strides = [1, 1]} : vector<16x32xbf16> to vector<16x8xbf16>
    %50 = vector.extract_strided_slice %46 {offsets = [0, 0], sizes = [16, 8], strides = [1, 1]} : vector<16x32xbf16> to vector<16x8xbf16>
    %51 = vector.extract_strided_slice %48 {offsets = [0, 0], sizes = [16, 8], strides = [1, 1]} : vector<16x32xbf16> to vector<16x8xbf16>
    %cst_23 = arith.constant dense<0.000000e+00> : vector<16x16xf32>
    %52 = tpu.matmul %49, %50, %cst_23 {dimension_numbers = #tpu.dot_dimension_numbers<[1], [1], [0], [0], [0, 0, 1, 0], [], []>} : vector<16x8xbf16>, vector<16x8xbf16>, vector<16x16xf32> -> vector<16x16xf32>
    %cst_24 = arith.constant 0.353553385 : f32
    %53 = vector.broadcast %cst_24 : f32 to vector<16x16xf32>
    %54 = arith.mulf %52, %53 : vector<16x16xf32>
    %55 = arith.addf %54, %34 : vector<16x16xf32>
    %cst_25 = arith.constant dense<0xFF800000> : vector<16xf32>
    %56 = vector.multi_reduction <maximumf>, %55, %cst_25 [1] : vector<16x16xf32> to vector<16xf32>
    %57 = vector.shape_cast %56 : vector<16xf32> to vector<16x1xf32>
    %58 = vector.broadcast %57 : vector<16x1xf32> to vector<16x16xf32>
    %59 = arith.subf %55, %58 : vector<16x16xf32>
    %60 = math.exp %59 : vector<16x16xf32>
    %cst_26 = arith.constant dense<0.000000e+00> : vector<16xf32>
    %61 = vector.multi_reduction <add>, %60, %cst_26 [1] : vector<16x16xf32> to vector<16xf32>
    %62 = vector.shape_cast %61 : vector<16xf32> to vector<16x1xf32>
    %63 = tpu.reciprocal %62 {approx = true} : vector<16x1xf32> -> vector<16x1xf32>
    %64 = vector.broadcast %63 : vector<16x1xf32> to vector<16x16xf32>
    %65 = arith.mulf %60, %64 : vector<16x16xf32>
    %66 = arith.truncf %65 : vector<16x16xf32> to vector<16x16xbf16>
    %cst_27 = arith.constant dense<0.000000e+00> : vector<16x8xf32>
    %67 = tpu.matmul %66, %51, %cst_27 {dimension_numbers = #tpu.dot_dimension_numbers<[1], [0], [0], [1], [0, 0, 1, 1], [], []>} : vector<16x16xbf16>, vector<16x8xbf16>, vector<16x8xf32> -> vector<16x8xf32>
    %68 = vector.extract_strided_slice %44 {offsets = [0, 8], sizes = [16, 8], strides = [1, 1]} : vector<16x32xbf16> to vector<16x8xbf16>
    %69 = vector.extract_strided_slice %46 {offsets = [0, 8], sizes = [16, 8], strides = [1, 1]} : vector<16x32xbf16> to vector<16x8xbf16>
    %70 = vector.extract_strided_slice %48 {offsets = [0, 8], sizes = [16, 8], strides = [1, 1]} : vector<16x32xbf16> to vector<16x8xbf16>
    %cst_28 = arith.constant dense<0.000000e+00> : vector<16x16xf32>
    %71 = tpu.matmul %68, %69, %cst_28 {dimension_numbers = #tpu.dot_dimension_numbers<[1], [1], [0], [0], [0, 0, 1, 0], [], []>} : vector<16x8xbf16>, vector<16x8xbf16>, vector<16x16xf32> -> vector<16x16xf32>
    %cst_29 = arith.constant 0.353553385 : f32
    %72 = vector.broadcast %cst_29 : f32 to vector<16x16xf32>
    %73 = arith.mulf %71, %72 : vector<16x16xf32>
    %74 = arith.addf %73, %34 : vector<16x16xf32>
    %cst_30 = arith.constant dense<0xFF800000> : vector<16xf32>
    %75 = vector.multi_reduction <maximumf>, %74, %cst_30 [1] : vector<16x16xf32> to vector<16xf32>
    %76 = vector.shape_cast %75 : vector<16xf32> to vector<16x1xf32>
    %77 = vector.broadcast %76 : vector<16x1xf32> to vector<16x16xf32>
    %78 = arith.subf %74, %77 : vector<16x16xf32>
    %79 = math.exp %78 : vector<16x16xf32>
    %cst_31 = arith.constant dense<0.000000e+00> : vector<16xf32>
    %80 = vector.multi_reduction <add>, %79, %cst_31 [1] : vector<16x16xf32> to vector<16xf32>
    %81 = vector.shape_cast %80 : vector<16xf32> to vector<16x1xf32>
    %82 = tpu.reciprocal %81 {approx = true} : vector<16x1xf32> -> vector<16x1xf32>
    %83 = vector.broadcast %82 : vector<16x1xf32> to vector<16x16xf32>
    %84 = arith.mulf %79, %83 : vector<16x16xf32>
    %85 = arith.truncf %84 : vector<16x16xf32> to vector<16x16xbf16>
    %cst_32 = arith.constant dense<0.000000e+00> : vector<16x8xf32>
    %86 = tpu.matmul %85, %70, %cst_32 {dimension_numbers = #tpu.dot_dimension_numbers<[1], [0], [0], [1], [0, 0, 1, 1], [], []>} : vector<16x16xbf16>, vector<16x8xbf16>, vector<16x8xf32> -> vector<16x8xf32>
    %87 = vector.extract_strided_slice %44 {offsets = [0, 16], sizes = [16, 8], strides = [1, 1]} : vector<16x32xbf16> to vector<16x8xbf16>
    %88 = vector.extract_strided_slice %46 {offsets = [0, 16], sizes = [16, 8], strides = [1, 1]} : vector<16x32xbf16> to vector<16x8xbf16>
    %89 = vector.extract_strided_slice %48 {offsets = [0, 16], sizes = [16, 8], strides = [1, 1]} : vector<16x32xbf16> to vector<16x8xbf16>
    %cst_33 = arith.constant dense<0.000000e+00> : vector<16x16xf32>
    %90 = tpu.matmul %87, %88, %cst_33 {dimension_numbers = #tpu.dot_dimension_numbers<[1], [1], [0], [0], [0, 0, 1, 0], [], []>} : vector<16x8xbf16>, vector<16x8xbf16>, vector<16x16xf32> -> vector<16x16xf32>
    %cst_34 = arith.constant 0.353553385 : f32
    %91 = vector.broadcast %cst_34 : f32 to vector<16x16xf32>
    %92 = arith.mulf %90, %91 : vector<16x16xf32>
    %93 = arith.addf %92, %34 : vector<16x16xf32>
    %cst_35 = arith.constant dense<0xFF800000> : vector<16xf32>
    %94 = vector.multi_reduction <maximumf>, %93, %cst_35 [1] : vector<16x16xf32> to vector<16xf32>
    %95 = vector.shape_cast %94 : vector<16xf32> to vector<16x1xf32>
    %96 = vector.broadcast %95 : vector<16x1xf32> to vector<16x16xf32>
    %97 = arith.subf %93, %96 : vector<16x16xf32>
    %98 = math.exp %97 : vector<16x16xf32>
    %cst_36 = arith.constant dense<0.000000e+00> : vector<16xf32>
    %99 = vector.multi_reduction <add>, %98, %cst_36 [1] : vector<16x16xf32> to vector<16xf32>
    %100 = vector.shape_cast %99 : vector<16xf32> to vector<16x1xf32>
    %101 = tpu.reciprocal %100 {approx = true} : vector<16x1xf32> -> vector<16x1xf32>
    %102 = vector.broadcast %101 : vector<16x1xf32> to vector<16x16xf32>
    %103 = arith.mulf %98, %102 : vector<16x16xf32>
    %104 = arith.truncf %103 : vector<16x16xf32> to vector<16x16xbf16>
    %cst_37 = arith.constant dense<0.000000e+00> : vector<16x8xf32>
    %105 = tpu.matmul %104, %89, %cst_37 {dimension_numbers = #tpu.dot_dimension_numbers<[1], [0], [0], [1], [0, 0, 1, 1], [], []>} : vector<16x16xbf16>, vector<16x8xbf16>, vector<16x8xf32> -> vector<16x8xf32>
    %106 = vector.extract_strided_slice %44 {offsets = [0, 24], sizes = [16, 8], strides = [1, 1]} : vector<16x32xbf16> to vector<16x8xbf16>
    %107 = vector.extract_strided_slice %46 {offsets = [0, 24], sizes = [16, 8], strides = [1, 1]} : vector<16x32xbf16> to vector<16x8xbf16>
    %108 = vector.extract_strided_slice %48 {offsets = [0, 24], sizes = [16, 8], strides = [1, 1]} : vector<16x32xbf16> to vector<16x8xbf16>
    %cst_38 = arith.constant dense<0.000000e+00> : vector<16x16xf32>
    %109 = tpu.matmul %106, %107, %cst_38 {dimension_numbers = #tpu.dot_dimension_numbers<[1], [1], [0], [0], [0, 0, 1, 0], [], []>} : vector<16x8xbf16>, vector<16x8xbf16>, vector<16x16xf32> -> vector<16x16xf32>
    %cst_39 = arith.constant 0.353553385 : f32
    %110 = vector.broadcast %cst_39 : f32 to vector<16x16xf32>
    %111 = arith.mulf %109, %110 : vector<16x16xf32>
    %112 = arith.addf %111, %34 : vector<16x16xf32>
    %cst_40 = arith.constant dense<0xFF800000> : vector<16xf32>
    %113 = vector.multi_reduction <maximumf>, %112, %cst_40 [1] : vector<16x16xf32> to vector<16xf32>
    %114 = vector.shape_cast %113 : vector<16xf32> to vector<16x1xf32>
    %115 = vector.broadcast %114 : vector<16x1xf32> to vector<16x16xf32>
    %116 = arith.subf %112, %115 : vector<16x16xf32>
    %117 = math.exp %116 : vector<16x16xf32>
    %cst_41 = arith.constant dense<0.000000e+00> : vector<16xf32>
    %118 = vector.multi_reduction <add>, %117, %cst_41 [1] : vector<16x16xf32> to vector<16xf32>
    %119 = vector.shape_cast %118 : vector<16xf32> to vector<16x1xf32>
    %120 = tpu.reciprocal %119 {approx = true} : vector<16x1xf32> -> vector<16x1xf32>
    %121 = vector.broadcast %120 : vector<16x1xf32> to vector<16x16xf32>
    %122 = arith.mulf %117, %121 : vector<16x16xf32>
    %123 = arith.truncf %122 : vector<16x16xf32> to vector<16x16xbf16>
    %cst_42 = arith.constant dense<0.000000e+00> : vector<16x8xf32>
    %124 = tpu.matmul %123, %108, %cst_42 {dimension_numbers = #tpu.dot_dimension_numbers<[1], [0], [0], [1], [0, 0, 1, 1], [], []>} : vector<16x16xbf16>, vector<16x8xbf16>, vector<16x8xf32> -> vector<16x8xf32>
    %125 = tpu.concatenate %67, %86, %105, %124 in 1 : vector<16x8xf32>, vector<16x8xf32>, vector<16x8xf32>, vector<16x8xf32> -> vector<16x32xf32>
    %126 = arith.truncf %125 : vector<16x32xf32> to vector<16x32xbf16>
    %c0_43 = arith.constant 0 : index
    %c0_44 = arith.constant 0 : index
    %c0_45 = arith.constant 0 : index
    %127 = vector.load %arg7[%c0_43, %c0_44, %c0_45] : memref<2x32x32xbf16, #tpu.memory_space<vmem>>, vector<1x32x32xbf16>
    %128 = vector.shape_cast %127 : vector<1x32x32xbf16> to vector<32x32xbf16>
    %cst_46 = arith.constant dense<0.000000e+00> : vector<16x32xf32>
    %129 = tpu.matmul %126, %128, %cst_46 {dimension_numbers = #tpu.dot_dimension_numbers<[1], [0], [0], [1], [0, 0, 1, 1], [], []>} : vector<16x32xbf16>, vector<32x32xbf16>, vector<16x32xf32> -> vector<16x32xf32>
    %c0_47 = arith.constant 0 : index
    %c0_48 = arith.constant 0 : index
    %c0_49 = arith.constant 0 : index
    %130 = vector.load %arg8[%c0_47, %c0_48, %c0_49] : memref<2x1x32xf32, #tpu.memory_space<vmem>>, vector<1x1x32xf32>
    %131 = vector.shape_cast %130 : vector<1x1x32xf32> to vector<1x32xf32>
    %132 = vector.broadcast %131 : vector<1x32xf32> to vector<16x32xf32>
    %133 = arith.addf %129, %132 : vector<16x32xf32>
    %134 = arith.addf %33, %133 : vector<16x32xf32>
    %c0_50 = arith.constant 0 : index
    %c0_51 = arith.constant 0 : index
    %c0_52 = arith.constant 0 : index
    %135 = vector.load %arg9[%c0_50, %c0_51, %c0_52] : memref<2x1x32xf32, #tpu.memory_space<vmem>>, vector<1x1x32xf32>
    %136 = vector.shape_cast %135 : vector<1x1x32xf32> to vector<1x32xf32>
    %c0_53 = arith.constant 0 : index
    %c0_54 = arith.constant 0 : index
    %c0_55 = arith.constant 0 : index
    %137 = vector.load %arg10[%c0_53, %c0_54, %c0_55] : memref<2x1x32xf32, #tpu.memory_space<vmem>>, vector<1x1x32xf32>
    %138 = vector.shape_cast %137 : vector<1x1x32xf32> to vector<1x32xf32>
    %cst_56 = arith.constant dense<0.000000e+00> : vector<16xf32>
    %139 = vector.multi_reduction <add>, %134, %cst_56 [1] : vector<16x32xf32> to vector<16xf32>
    %140 = vector.shape_cast %139 : vector<16xf32> to vector<16x1xf32>
    %cst_57 = arith.constant 3.200000e+01 : f32
    %141 = vector.broadcast %cst_57 : f32 to vector<16x1xf32>
    %142 = arith.divf %140, %141 : vector<16x1xf32>
    %143 = vector.broadcast %142 : vector<16x1xf32> to vector<16x32xf32>
    %144 = arith.subf %134, %143 : vector<16x32xf32>
    %145 = arith.mulf %144, %144 : vector<16x32xf32>
    %cst_58 = arith.constant dense<0.000000e+00> : vector<16xf32>
    %146 = vector.multi_reduction <add>, %145, %cst_58 [1] : vector<16x32xf32> to vector<16xf32>
    %147 = vector.shape_cast %146 : vector<16xf32> to vector<16x1xf32>
    %cst_59 = arith.constant 3.200000e+01 : f32
    %148 = vector.broadcast %cst_59 : f32 to vector<16x1xf32>
    %149 = arith.divf %147, %148 : vector<16x1xf32>
    %150 = vector.broadcast %142 : vector<16x1xf32> to vector<16x32xf32>
    %151 = arith.subf %134, %150 : vector<16x32xf32>
    %cst_60 = arith.constant 1.000000e-07 : f32
    %152 = vector.broadcast %cst_60 : f32 to vector<16x1xf32>
    %153 = arith.addf %149, %152 : vector<16x1xf32>
    %154 = math.rsqrt %153 : vector<16x1xf32>
    %155 = vector.broadcast %154 : vector<16x1xf32> to vector<16x32xf32>
    %156 = arith.mulf %151, %155 : vector<16x32xf32>
    %157 = vector.broadcast %136 : vector<1x32xf32> to vector<16x32xf32>
    %158 = arith.mulf %156, %157 : vector<16x32xf32>
    %159 = vector.broadcast %138 : vector<1x32xf32> to vector<16x32xf32>
    %160 = arith.addf %158, %159 : vector<16x32xf32>
    %161 = arith.truncf %160 : vector<16x32xf32> to vector<16x32xbf16>
    %c0_61 = arith.constant 0 : index
    %c0_62 = arith.constant 0 : index
    %c0_63 = arith.constant 0 : index
    %162 = vector.load %arg11[%c0_61, %c0_62, %c0_63] : memref<2x32x64xbf16, #tpu.memory_space<vmem>>, vector<1x32x64xbf16>
    %163 = vector.shape_cast %162 : vector<1x32x64xbf16> to vector<32x64xbf16>
    %cst_64 = arith.constant dense<0.000000e+00> : vector<16x64xf32>
    %164 = tpu.matmul %161, %163, %cst_64 {dimension_numbers = #tpu.dot_dimension_numbers<[1], [0], [0], [1], [0, 0, 1, 1], [], []>} : vector<16x32xbf16>, vector<32x64xbf16>, vector<16x64xf32> -> vector<16x64xf32>
    %c0_65 = arith.constant 0 : index
    %c0_66 = arith.constant 0 : index
    %c0_67 = arith.constant 0 : index
    %165 = vector.load %arg12[%c0_65, %c0_66, %c0_67] : memref<2x1x64xf32, #tpu.memory_space<vmem>>, vector<1x1x64xf32>
    %166 = vector.shape_cast %165 : vector<1x1x64xf32> to vector<1x64xf32>
    %167 = vector.broadcast %166 : vector<1x64xf32> to vector<16x64xf32>
    %168 = arith.addf %164, %167 : vector<16x64xf32>
    %169 = arith.mulf %168, %168 : vector<16x64xf32>
    %170 = arith.mulf %168, %169 : vector<16x64xf32>
    %cst_68 = arith.constant 4.471500e-02 : f32
    %171 = vector.broadcast %cst_68 : f32 to vector<16x64xf32>
    %172 = arith.mulf %171, %170 : vector<16x64xf32>
    %173 = arith.addf %168, %172 : vector<16x64xf32>
    %cst_69 = arith.constant 0.797884583 : f32
    %174 = vector.broadcast %cst_69 : f32 to vector<16x64xf32>
    %175 = arith.mulf %174, %173 : vector<16x64xf32>
    %176 = math.tanh %175 : vector<16x64xf32>
    %cst_70 = arith.constant 1.000000e+00 : f32
    %177 = vector.broadcast %cst_70 : f32 to vector<16x64xf32>
    %178 = arith.addf %177, %176 : vector<16x64xf32>
    %cst_71 = arith.constant 5.000000e-01 : f32
    %179 = vector.broadcast %cst_71 : f32 to vector<16x64xf32>
    %180 = arith.mulf %179, %178 : vector<16x64xf32>
    %181 = arith.mulf %168, %180 : vector<16x64xf32>
    %182 = arith.truncf %181 : vector<16x64xf32> to vector<16x64xbf16>
    %c0_72 = arith.constant 0 : index
    %c0_73 = arith.constant 0 : index
    %c0_74 = arith.constant 0 : index
    %183 = vector.load %arg13[%c0_72, %c0_73, %c0_74] : memref<2x64x32xbf16, #tpu.memory_space<vmem>>, vector<1x64x32xbf16>
    %184 = vector.shape_cast %183 : vector<1x64x32xbf16> to vector<64x32xbf16>
    %cst_75 = arith.constant dense<0.000000e+00> : vector<16x32xf32>
    %185 = tpu.matmul %182, %184, %cst_75 {dimension_numbers = #tpu.dot_dimension_numbers<[1], [0], [0], [1], [0, 0, 1, 1], [], []>} : vector<16x64xbf16>, vector<64x32xbf16>, vector<16x32xf32> -> vector<16x32xf32>
    %c0_76 = arith.constant 0 : index
    %c0_77 = arith.constant 0 : index
    %c0_78 = arith.constant 0 : index
    %186 = vector.load %arg14[%c0_76, %c0_77, %c0_78] : memref<2x1x32xf32, #tpu.memory_space<vmem>>, vector<1x1x32xf32>
    %187 = vector.shape_cast %186 : vector<1x1x32xf32> to vector<1x32xf32>
    %188 = vector.broadcast %187 : vector<1x32xf32> to vector<16x32xf32>
    %189 = arith.addf %185, %188 : vector<16x32xf32>
    %190 = arith.addf %160, %189 : vector<16x32xf32>
    %c0_79 = arith.constant 0 : index
    %c0_80 = arith.constant 0 : index
    %c0_81 = arith.constant 0 : index
    %191 = vector.load %arg15[%c0_79, %c0_80, %c0_81] : memref<2x1x32xf32, #tpu.memory_space<vmem>>, vector<1x1x32xf32>
    %192 = vector.shape_cast %191 : vector<1x1x32xf32> to vector<1x32xf32>
    %c0_82 = arith.constant 0 : index
    %c0_83 = arith.constant 0 : index
    %c0_84 = arith.constant 0 : index
    %193 = vector.load %arg16[%c0_82, %c0_83, %c0_84] : memref<2x1x32xf32, #tpu.memory_space<vmem>>, vector<1x1x32xf32>
    %194 = vector.shape_cast %193 : vector<1x1x32xf32> to vector<1x32xf32>
    %cst_85 = arith.constant dense<0.000000e+00> : vector<16xf32>
    %195 = vector.multi_reduction <add>, %190, %cst_85 [1] : vector<16x32xf32> to vector<16xf32>
    %196 = vector.shape_cast %195 : vector<16xf32> to vector<16x1xf32>
    %cst_86 = arith.constant 3.200000e+01 : f32
    %197 = vector.broadcast %cst_86 : f32 to vector<16x1xf32>
    %198 = arith.divf %196, %197 : vector<16x1xf32>
    %199 = vector.broadcast %198 : vector<16x1xf32> to vector<16x32xf32>
    %200 = arith.subf %190, %199 : vector<16x32xf32>
    %201 = arith.mulf %200, %200 : vector<16x32xf32>
    %cst_87 = arith.constant dense<0.000000e+00> : vector<16xf32>
    %202 = vector.multi_reduction <add>, %201, %cst_87 [1] : vector<16x32xf32> to vector<16xf32>
    %203 = vector.shape_cast %202 : vector<16xf32> to vector<16x1xf32>
    %cst_88 = arith.constant 3.200000e+01 : f32
    %204 = vector.broadcast %cst_88 : f32 to vector<16x1xf32>
    %205 = arith.divf %203, %204 : vector<16x1xf32>
    %206 = vector.broadcast %198 : vector<16x1xf32> to vector<16x32xf32>
    %207 = arith.subf %190, %206 : vector<16x32xf32>
    %cst_89 = arith.constant 1.000000e-07 : f32
    %208 = vector.broadcast %cst_89 : f32 to vector<16x1xf32>
    %209 = arith.addf %205, %208 : vector<16x1xf32>
    %210 = math.rsqrt %209 : vector<16x1xf32>
    %211 = vector.broadcast %210 : vector<16x1xf32> to vector<16x32xf32>
    %212 = arith.mulf %207, %211 : vector<16x32xf32>
    %213 = vector.broadcast %192 : vector<1x32xf32> to vector<16x32xf32>
    %214 = arith.mulf %212, %213 : vector<16x32xf32>
    %215 = vector.broadcast %194 : vector<1x32xf32> to vector<16x32xf32>
    %216 = arith.addf %214, %215 : vector<16x32xf32>
    %217 = arith.truncf %216 : vector<16x32xf32> to vector<16x32xbf16>
    %c1 = arith.constant 1 : index
    %c0_90 = arith.constant 0 : index
    %c0_91 = arith.constant 0 : index
    %218 = vector.load %arg5[%c1, %c0_90, %c0_91] : memref<2x32x96xbf16, #tpu.memory_space<vmem>>, vector<1x32x96xbf16>
    %219 = vector.shape_cast %218 : vector<1x32x96xbf16> to vector<32x96xbf16>
    %cst_92 = arith.constant dense<0.000000e+00> : vector<16x96xf32>
    %220 = tpu.matmul %217, %219, %cst_92 {dimension_numbers = #tpu.dot_dimension_numbers<[1], [0], [0], [1], [0, 0, 1, 1], [], []>} : vector<16x32xbf16>, vector<32x96xbf16>, vector<16x96xf32> -> vector<16x96xf32>
    %c1_93 = arith.constant 1 : index
    %c0_94 = arith.constant 0 : index
    %c0_95 = arith.constant 0 : index
    %221 = vector.load %arg6[%c1_93, %c0_94, %c0_95] : memref<2x1x96xf32, #tpu.memory_space<vmem>>, vector<1x1x96xf32>
    %222 = vector.shape_cast %221 : vector<1x1x96xf32> to vector<1x96xf32>
    %223 = vector.broadcast %222 : vector<1x96xf32> to vector<16x96xf32>
    %224 = arith.addf %220, %223 : vector<16x96xf32>
    %225 = vector.extract_strided_slice %224 {offsets = [0, 0], sizes = [16, 32], strides = [1, 1]} : vector<16x96xf32> to vector<16x32xf32>
    %226 = arith.truncf %225 : vector<16x32xf32> to vector<16x32xbf16>
    %227 = vector.extract_strided_slice %224 {offsets = [0, 32], sizes = [16, 32], strides = [1, 1]} : vector<16x96xf32> to vector<16x32xf32>
    %228 = arith.truncf %227 : vector<16x32xf32> to vector<16x32xbf16>
    %229 = vector.extract_strided_slice %224 {offsets = [0, 64], sizes = [16, 32], strides = [1, 1]} : vector<16x96xf32> to vector<16x32xf32>
    %230 = arith.truncf %229 : vector<16x32xf32> to vector<16x32xbf16>
    %231 = vector.extract_strided_slice %226 {offsets = [0, 0], sizes = [16, 8], strides = [1, 1]} : vector<16x32xbf16> to vector<16x8xbf16>
    %232 = vector.extract_strided_slice %228 {offsets = [0, 0], sizes = [16, 8], strides = [1, 1]} : vector<16x32xbf16> to vector<16x8xbf16>
    %233 = vector.extract_strided_slice %230 {offsets = [0, 0], sizes = [16, 8], strides = [1, 1]} : vector<16x32xbf16> to vector<16x8xbf16>
    %cst_96 = arith.constant dense<0.000000e+00> : vector<16x16xf32>
    %234 = tpu.matmul %231, %232, %cst_96 {dimension_numbers = #tpu.dot_dimension_numbers<[1], [1], [0], [0], [0, 0, 1, 0], [], []>} : vector<16x8xbf16>, vector<16x8xbf16>, vector<16x16xf32> -> vector<16x16xf32>
    %cst_97 = arith.constant 0.353553385 : f32
    %235 = vector.broadcast %cst_97 : f32 to vector<16x16xf32>
    %236 = arith.mulf %234, %235 : vector<16x16xf32>
    %237 = arith.addf %236, %34 : vector<16x16xf32>
    %cst_98 = arith.constant dense<0xFF800000> : vector<16xf32>
    %238 = vector.multi_reduction <maximumf>, %237, %cst_98 [1] : vector<16x16xf32> to vector<16xf32>
    %239 = vector.shape_cast %238 : vector<16xf32> to vector<16x1xf32>
    %240 = vector.broadcast %239 : vector<16x1xf32> to vector<16x16xf32>
    %241 = arith.subf %237, %240 : vector<16x16xf32>
    %242 = math.exp %241 : vector<16x16xf32>
    %cst_99 = arith.constant dense<0.000000e+00> : vector<16xf32>
    %243 = vector.multi_reduction <add>, %242, %cst_99 [1] : vector<16x16xf32> to vector<16xf32>
    %244 = vector.shape_cast %243 : vector<16xf32> to vector<16x1xf32>
    %245 = tpu.reciprocal %244 {approx = true} : vector<16x1xf32> -> vector<16x1xf32>
    %246 = vector.broadcast %245 : vector<16x1xf32> to vector<16x16xf32>
    %247 = arith.mulf %242, %246 : vector<16x16xf32>
    %248 = arith.truncf %247 : vector<16x16xf32> to vector<16x16xbf16>
    %cst_100 = arith.constant dense<0.000000e+00> : vector<16x8xf32>
    %249 = tpu.matmul %248, %233, %cst_100 {dimension_numbers = #tpu.dot_dimension_numbers<[1], [0], [0], [1], [0, 0, 1, 1], [], []>} : vector<16x16xbf16>, vector<16x8xbf16>, vector<16x8xf32> -> vector<16x8xf32>
    %250 = vector.extract_strided_slice %226 {offsets = [0, 8], sizes = [16, 8], strides = [1, 1]} : vector<16x32xbf16> to vector<16x8xbf16>
    %251 = vector.extract_strided_slice %228 {offsets = [0, 8], sizes = [16, 8], strides = [1, 1]} : vector<16x32xbf16> to vector<16x8xbf16>
    %252 = vector.extract_strided_slice %230 {offsets = [0, 8], sizes = [16, 8], strides = [1, 1]} : vector<16x32xbf16> to vector<16x8xbf16>
    %cst_101 = arith.constant dense<0.000000e+00> : vector<16x16xf32>
    %253 = tpu.matmul %250, %251, %cst_101 {dimension_numbers = #tpu.dot_dimension_numbers<[1], [1], [0], [0], [0, 0, 1, 0], [], []>} : vector<16x8xbf16>, vector<16x8xbf16>, vector<16x16xf32> -> vector<16x16xf32>
    %cst_102 = arith.constant 0.353553385 : f32
    %254 = vector.broadcast %cst_102 : f32 to vector<16x16xf32>
    %255 = arith.mulf %253, %254 : vector<16x16xf32>
    %256 = arith.addf %255, %34 : vector<16x16xf32>
    %cst_103 = arith.constant dense<0xFF800000> : vector<16xf32>
    %257 = vector.multi_reduction <maximumf>, %256, %cst_103 [1] : vector<16x16xf32> to vector<16xf32>
    %258 = vector.shape_cast %257 : vector<16xf32> to vector<16x1xf32>
    %259 = vector.broadcast %258 : vector<16x1xf32> to vector<16x16xf32>
    %260 = arith.subf %256, %259 : vector<16x16xf32>
    %261 = math.exp %260 : vector<16x16xf32>
    %cst_104 = arith.constant dense<0.000000e+00> : vector<16xf32>
    %262 = vector.multi_reduction <add>, %261, %cst_104 [1] : vector<16x16xf32> to vector<16xf32>
    %263 = vector.shape_cast %262 : vector<16xf32> to vector<16x1xf32>
    %264 = tpu.reciprocal %263 {approx = true} : vector<16x1xf32> -> vector<16x1xf32>
    %265 = vector.broadcast %264 : vector<16x1xf32> to vector<16x16xf32>
    %266 = arith.mulf %261, %265 : vector<16x16xf32>
    %267 = arith.truncf %266 : vector<16x16xf32> to vector<16x16xbf16>
    %cst_105 = arith.constant dense<0.000000e+00> : vector<16x8xf32>
    %268 = tpu.matmul %267, %252, %cst_105 {dimension_numbers = #tpu.dot_dimension_numbers<[1], [0], [0], [1], [0, 0, 1, 1], [], []>} : vector<16x16xbf16>, vector<16x8xbf16>, vector<16x8xf32> -> vector<16x8xf32>
    %269 = vector.extract_strided_slice %226 {offsets = [0, 16], sizes = [16, 8], strides = [1, 1]} : vector<16x32xbf16> to vector<16x8xbf16>
    %270 = vector.extract_strided_slice %228 {offsets = [0, 16], sizes = [16, 8], strides = [1, 1]} : vector<16x32xbf16> to vector<16x8xbf16>
    %271 = vector.extract_strided_slice %230 {offsets = [0, 16], sizes = [16, 8], strides = [1, 1]} : vector<16x32xbf16> to vector<16x8xbf16>
    %cst_106 = arith.constant dense<0.000000e+00> : vector<16x16xf32>
    %272 = tpu.matmul %269, %270, %cst_106 {dimension_numbers = #tpu.dot_dimension_numbers<[1], [1], [0], [0], [0, 0, 1, 0], [], []>} : vector<16x8xbf16>, vector<16x8xbf16>, vector<16x16xf32> -> vector<16x16xf32>
    %cst_107 = arith.constant 0.353553385 : f32
    %273 = vector.broadcast %cst_107 : f32 to vector<16x16xf32>
    %274 = arith.mulf %272, %273 : vector<16x16xf32>
    %275 = arith.addf %274, %34 : vector<16x16xf32>
    %cst_108 = arith.constant dense<0xFF800000> : vector<16xf32>
    %276 = vector.multi_reduction <maximumf>, %275, %cst_108 [1] : vector<16x16xf32> to vector<16xf32>
    %277 = vector.shape_cast %276 : vector<16xf32> to vector<16x1xf32>
    %278 = vector.broadcast %277 : vector<16x1xf32> to vector<16x16xf32>
    %279 = arith.subf %275, %278 : vector<16x16xf32>
    %280 = math.exp %279 : vector<16x16xf32>
    %cst_109 = arith.constant dense<0.000000e+00> : vector<16xf32>
    %281 = vector.multi_reduction <add>, %280, %cst_109 [1] : vector<16x16xf32> to vector<16xf32>
    %282 = vector.shape_cast %281 : vector<16xf32> to vector<16x1xf32>
    %283 = tpu.reciprocal %282 {approx = true} : vector<16x1xf32> -> vector<16x1xf32>
    %284 = vector.broadcast %283 : vector<16x1xf32> to vector<16x16xf32>
    %285 = arith.mulf %280, %284 : vector<16x16xf32>
    %286 = arith.truncf %285 : vector<16x16xf32> to vector<16x16xbf16>
    %cst_110 = arith.constant dense<0.000000e+00> : vector<16x8xf32>
    %287 = tpu.matmul %286, %271, %cst_110 {dimension_numbers = #tpu.dot_dimension_numbers<[1], [0], [0], [1], [0, 0, 1, 1], [], []>} : vector<16x16xbf16>, vector<16x8xbf16>, vector<16x8xf32> -> vector<16x8xf32>
    %288 = vector.extract_strided_slice %226 {offsets = [0, 24], sizes = [16, 8], strides = [1, 1]} : vector<16x32xbf16> to vector<16x8xbf16>
    %289 = vector.extract_strided_slice %228 {offsets = [0, 24], sizes = [16, 8], strides = [1, 1]} : vector<16x32xbf16> to vector<16x8xbf16>
    %290 = vector.extract_strided_slice %230 {offsets = [0, 24], sizes = [16, 8], strides = [1, 1]} : vector<16x32xbf16> to vector<16x8xbf16>
    %cst_111 = arith.constant dense<0.000000e+00> : vector<16x16xf32>
    %291 = tpu.matmul %288, %289, %cst_111 {dimension_numbers = #tpu.dot_dimension_numbers<[1], [1], [0], [0], [0, 0, 1, 0], [], []>} : vector<16x8xbf16>, vector<16x8xbf16>, vector<16x16xf32> -> vector<16x16xf32>
    %cst_112 = arith.constant 0.353553385 : f32
    %292 = vector.broadcast %cst_112 : f32 to vector<16x16xf32>
    %293 = arith.mulf %291, %292 : vector<16x16xf32>
    %294 = arith.addf %293, %34 : vector<16x16xf32>
    %cst_113 = arith.constant dense<0xFF800000> : vector<16xf32>
    %295 = vector.multi_reduction <maximumf>, %294, %cst_113 [1] : vector<16x16xf32> to vector<16xf32>
    %296 = vector.shape_cast %295 : vector<16xf32> to vector<16x1xf32>
    %297 = vector.broadcast %296 : vector<16x1xf32> to vector<16x16xf32>
    %298 = arith.subf %294, %297 : vector<16x16xf32>
    %299 = math.exp %298 : vector<16x16xf32>
    %cst_114 = arith.constant dense<0.000000e+00> : vector<16xf32>
    %300 = vector.multi_reduction <add>, %299, %cst_114 [1] : vector<16x16xf32> to vector<16xf32>
    %301 = vector.shape_cast %300 : vector<16xf32> to vector<16x1xf32>
    %302 = tpu.reciprocal %301 {approx = true} : vector<16x1xf32> -> vector<16x1xf32>
    %303 = vector.broadcast %302 : vector<16x1xf32> to vector<16x16xf32>
    %304 = arith.mulf %299, %303 : vector<16x16xf32>
    %305 = arith.truncf %304 : vector<16x16xf32> to vector<16x16xbf16>
    %cst_115 = arith.constant dense<0.000000e+00> : vector<16x8xf32>
    %306 = tpu.matmul %305, %290, %cst_115 {dimension_numbers = #tpu.dot_dimension_numbers<[1], [0], [0], [1], [0, 0, 1, 1], [], []>} : vector<16x16xbf16>, vector<16x8xbf16>, vector<16x8xf32> -> vector<16x8xf32>
    %307 = tpu.concatenate %249, %268, %287, %306 in 1 : vector<16x8xf32>, vector<16x8xf32>, vector<16x8xf32>, vector<16x8xf32> -> vector<16x32xf32>
    %308 = arith.truncf %307 : vector<16x32xf32> to vector<16x32xbf16>
    %c1_116 = arith.constant 1 : index
    %c0_117 = arith.constant 0 : index
    %c0_118 = arith.constant 0 : index
    %309 = vector.load %arg7[%c1_116, %c0_117, %c0_118] : memref<2x32x32xbf16, #tpu.memory_space<vmem>>, vector<1x32x32xbf16>
    %310 = vector.shape_cast %309 : vector<1x32x32xbf16> to vector<32x32xbf16>
    %cst_119 = arith.constant dense<0.000000e+00> : vector<16x32xf32>
    %311 = tpu.matmul %308, %310, %cst_119 {dimension_numbers = #tpu.dot_dimension_numbers<[1], [0], [0], [1], [0, 0, 1, 1], [], []>} : vector<16x32xbf16>, vector<32x32xbf16>, vector<16x32xf32> -> vector<16x32xf32>
    %c1_120 = arith.constant 1 : index
    %c0_121 = arith.constant 0 : index
    %c0_122 = arith.constant 0 : index
    %312 = vector.load %arg8[%c1_120, %c0_121, %c0_122] : memref<2x1x32xf32, #tpu.memory_space<vmem>>, vector<1x1x32xf32>
    %313 = vector.shape_cast %312 : vector<1x1x32xf32> to vector<1x32xf32>
    %314 = vector.broadcast %313 : vector<1x32xf32> to vector<16x32xf32>
    %315 = arith.addf %311, %314 : vector<16x32xf32>
    %316 = arith.addf %216, %315 : vector<16x32xf32>
    %c1_123 = arith.constant 1 : index
    %c0_124 = arith.constant 0 : index
    %c0_125 = arith.constant 0 : index
    %317 = vector.load %arg9[%c1_123, %c0_124, %c0_125] : memref<2x1x32xf32, #tpu.memory_space<vmem>>, vector<1x1x32xf32>
    %318 = vector.shape_cast %317 : vector<1x1x32xf32> to vector<1x32xf32>
    %c1_126 = arith.constant 1 : index
    %c0_127 = arith.constant 0 : index
    %c0_128 = arith.constant 0 : index
    %319 = vector.load %arg10[%c1_126, %c0_127, %c0_128] : memref<2x1x32xf32, #tpu.memory_space<vmem>>, vector<1x1x32xf32>
    %320 = vector.shape_cast %319 : vector<1x1x32xf32> to vector<1x32xf32>
    %cst_129 = arith.constant dense<0.000000e+00> : vector<16xf32>
    %321 = vector.multi_reduction <add>, %316, %cst_129 [1] : vector<16x32xf32> to vector<16xf32>
    %322 = vector.shape_cast %321 : vector<16xf32> to vector<16x1xf32>
    %cst_130 = arith.constant 3.200000e+01 : f32
    %323 = vector.broadcast %cst_130 : f32 to vector<16x1xf32>
    %324 = arith.divf %322, %323 : vector<16x1xf32>
    %325 = vector.broadcast %324 : vector<16x1xf32> to vector<16x32xf32>
    %326 = arith.subf %316, %325 : vector<16x32xf32>
    %327 = arith.mulf %326, %326 : vector<16x32xf32>
    %cst_131 = arith.constant dense<0.000000e+00> : vector<16xf32>
    %328 = vector.multi_reduction <add>, %327, %cst_131 [1] : vector<16x32xf32> to vector<16xf32>
    %329 = vector.shape_cast %328 : vector<16xf32> to vector<16x1xf32>
    %cst_132 = arith.constant 3.200000e+01 : f32
    %330 = vector.broadcast %cst_132 : f32 to vector<16x1xf32>
    %331 = arith.divf %329, %330 : vector<16x1xf32>
    %332 = vector.broadcast %324 : vector<16x1xf32> to vector<16x32xf32>
    %333 = arith.subf %316, %332 : vector<16x32xf32>
    %cst_133 = arith.constant 1.000000e-07 : f32
    %334 = vector.broadcast %cst_133 : f32 to vector<16x1xf32>
    %335 = arith.addf %331, %334 : vector<16x1xf32>
    %336 = math.rsqrt %335 : vector<16x1xf32>
    %337 = vector.broadcast %336 : vector<16x1xf32> to vector<16x32xf32>
    %338 = arith.mulf %333, %337 : vector<16x32xf32>
    %339 = vector.broadcast %318 : vector<1x32xf32> to vector<16x32xf32>
    %340 = arith.mulf %338, %339 : vector<16x32xf32>
    %341 = vector.broadcast %320 : vector<1x32xf32> to vector<16x32xf32>
    %342 = arith.addf %340, %341 : vector<16x32xf32>
    %343 = arith.truncf %342 : vector<16x32xf32> to vector<16x32xbf16>
    %c1_134 = arith.constant 1 : index
    %c0_135 = arith.constant 0 : index
    %c0_136 = arith.constant 0 : index
    %344 = vector.load %arg11[%c1_134, %c0_135, %c0_136] : memref<2x32x64xbf16, #tpu.memory_space<vmem>>, vector<1x32x64xbf16>
    %345 = vector.shape_cast %344 : vector<1x32x64xbf16> to vector<32x64xbf16>
    %cst_137 = arith.constant dense<0.000000e+00> : vector<16x64xf32>
    %346 = tpu.matmul %343, %345, %cst_137 {dimension_numbers = #tpu.dot_dimension_numbers<[1], [0], [0], [1], [0, 0, 1, 1], [], []>} : vector<16x32xbf16>, vector<32x64xbf16>, vector<16x64xf32> -> vector<16x64xf32>
    %c1_138 = arith.constant 1 : index
    %c0_139 = arith.constant 0 : index
    %c0_140 = arith.constant 0 : index
    %347 = vector.load %arg12[%c1_138, %c0_139, %c0_140] : memref<2x1x64xf32, #tpu.memory_space<vmem>>, vector<1x1x64xf32>
    %348 = vector.shape_cast %347 : vector<1x1x64xf32> to vector<1x64xf32>
    %349 = vector.broadcast %348 : vector<1x64xf32> to vector<16x64xf32>
    %350 = arith.addf %346, %349 : vector<16x64xf32>
    %351 = arith.mulf %350, %350 : vector<16x64xf32>
    %352 = arith.mulf %350, %351 : vector<16x64xf32>
    %cst_141 = arith.constant 4.471500e-02 : f32
    %353 = vector.broadcast %cst_141 : f32 to vector<16x64xf32>
    %354 = arith.mulf %353, %352 : vector<16x64xf32>
    %355 = arith.addf %350, %354 : vector<16x64xf32>
    %cst_142 = arith.constant 0.797884583 : f32
    %356 = vector.broadcast %cst_142 : f32 to vector<16x64xf32>
    %357 = arith.mulf %356, %355 : vector<16x64xf32>
    %358 = math.tanh %357 : vector<16x64xf32>
    %cst_143 = arith.constant 1.000000e+00 : f32
    %359 = vector.broadcast %cst_143 : f32 to vector<16x64xf32>
    %360 = arith.addf %359, %358 : vector<16x64xf32>
    %cst_144 = arith.constant 5.000000e-01 : f32
    %361 = vector.broadcast %cst_144 : f32 to vector<16x64xf32>
    %362 = arith.mulf %361, %360 : vector<16x64xf32>
    %363 = arith.mulf %350, %362 : vector<16x64xf32>
    %364 = arith.truncf %363 : vector<16x64xf32> to vector<16x64xbf16>
    %c1_145 = arith.constant 1 : index
    %c0_146 = arith.constant 0 : index
    %c0_147 = arith.constant 0 : index
    %365 = vector.load %arg13[%c1_145, %c0_146, %c0_147] : memref<2x64x32xbf16, #tpu.memory_space<vmem>>, vector<1x64x32xbf16>
    %366 = vector.shape_cast %365 : vector<1x64x32xbf16> to vector<64x32xbf16>
    %cst_148 = arith.constant dense<0.000000e+00> : vector<16x32xf32>
    %367 = tpu.matmul %364, %366, %cst_148 {dimension_numbers = #tpu.dot_dimension_numbers<[1], [0], [0], [1], [0, 0, 1, 1], [], []>} : vector<16x64xbf16>, vector<64x32xbf16>, vector<16x32xf32> -> vector<16x32xf32>
    %c1_149 = arith.constant 1 : index
    %c0_150 = arith.constant 0 : index
    %c0_151 = arith.constant 0 : index
    %368 = vector.load %arg14[%c1_149, %c0_150, %c0_151] : memref<2x1x32xf32, #tpu.memory_space<vmem>>, vector<1x1x32xf32>
    %369 = vector.shape_cast %368 : vector<1x1x32xf32> to vector<1x32xf32>
    %370 = vector.broadcast %369 : vector<1x32xf32> to vector<16x32xf32>
    %371 = arith.addf %367, %370 : vector<16x32xf32>
    %372 = arith.addf %342, %371 : vector<16x32xf32>
    %c1_152 = arith.constant 1 : index
    %c0_153 = arith.constant 0 : index
    %c0_154 = arith.constant 0 : index
    %373 = vector.load %arg15[%c1_152, %c0_153, %c0_154] : memref<2x1x32xf32, #tpu.memory_space<vmem>>, vector<1x1x32xf32>
    %374 = vector.shape_cast %373 : vector<1x1x32xf32> to vector<1x32xf32>
    %c1_155 = arith.constant 1 : index
    %c0_156 = arith.constant 0 : index
    %c0_157 = arith.constant 0 : index
    %375 = vector.load %arg16[%c1_155, %c0_156, %c0_157] : memref<2x1x32xf32, #tpu.memory_space<vmem>>, vector<1x1x32xf32>
    %376 = vector.shape_cast %375 : vector<1x1x32xf32> to vector<1x32xf32>
    %cst_158 = arith.constant dense<0.000000e+00> : vector<16xf32>
    %377 = vector.multi_reduction <add>, %372, %cst_158 [1] : vector<16x32xf32> to vector<16xf32>
    %378 = vector.shape_cast %377 : vector<16xf32> to vector<16x1xf32>
    %cst_159 = arith.constant 3.200000e+01 : f32
    %379 = vector.broadcast %cst_159 : f32 to vector<16x1xf32>
    %380 = arith.divf %378, %379 : vector<16x1xf32>
    %381 = vector.broadcast %380 : vector<16x1xf32> to vector<16x32xf32>
    %382 = arith.subf %372, %381 : vector<16x32xf32>
    %383 = arith.mulf %382, %382 : vector<16x32xf32>
    %cst_160 = arith.constant dense<0.000000e+00> : vector<16xf32>
    %384 = vector.multi_reduction <add>, %383, %cst_160 [1] : vector<16x32xf32> to vector<16xf32>
    %385 = vector.shape_cast %384 : vector<16xf32> to vector<16x1xf32>
    %cst_161 = arith.constant 3.200000e+01 : f32
    %386 = vector.broadcast %cst_161 : f32 to vector<16x1xf32>
    %387 = arith.divf %385, %386 : vector<16x1xf32>
    %388 = vector.broadcast %380 : vector<16x1xf32> to vector<16x32xf32>
    %389 = arith.subf %372, %388 : vector<16x32xf32>
    %cst_162 = arith.constant 1.000000e-07 : f32
    %390 = vector.broadcast %cst_162 : f32 to vector<16x1xf32>
    %391 = arith.addf %387, %390 : vector<16x1xf32>
    %392 = math.rsqrt %391 : vector<16x1xf32>
    %393 = vector.broadcast %392 : vector<16x1xf32> to vector<16x32xf32>
    %394 = arith.mulf %389, %393 : vector<16x32xf32>
    %395 = vector.broadcast %374 : vector<1x32xf32> to vector<16x32xf32>
    %396 = arith.mulf %394, %395 : vector<16x32xf32>
    %397 = vector.broadcast %376 : vector<1x32xf32> to vector<16x32xf32>
    %398 = arith.addf %396, %397 : vector<16x32xf32>
    %399 = vector.extract_strided_slice %398 {offsets = [0, 0], sizes = [1, 32], strides = [1, 1]} : vector<16x32xf32> to vector<1x32xf32>
    %400 = vector.extract_strided_slice %398 {offsets = [8, 0], sizes = [1, 32], strides = [1, 1]} : vector<16x32xf32> to vector<1x32xf32>
    %401 = tpu.concatenate %399, %400 in 0 : vector<1x32xf32>, vector<1x32xf32> -> vector<2x32xf32>
    %402 = arith.truncf %401 : vector<2x32xf32> to vector<2x32xbf16>
    %c0_163 = arith.constant 0 : index
    %c0_164 = arith.constant 0 : index
    %403 = vector.load %arg17[%c0_163, %c0_164] : memref<32x32xbf16, #tpu.memory_space<vmem>>, vector<32x32xbf16>
    %cst_165 = arith.constant dense<0.000000e+00> : vector<2x32xf32>
    %404 = tpu.matmul %402, %403, %cst_165 {dimension_numbers = #tpu.dot_dimension_numbers<[1], [0], [0], [1], [0, 0, 1, 1], [], []>} : vector<2x32xbf16>, vector<32x32xbf16>, vector<2x32xf32> -> vector<2x32xf32>
    %c0_166 = arith.constant 0 : index
    %c0_167 = arith.constant 0 : index
    %405 = vector.load %arg18[%c0_166, %c0_167] : memref<1x32xf32, #tpu.memory_space<vmem>>, vector<1x32xf32>
    %406 = vector.broadcast %405 : vector<1x32xf32> to vector<2x32xf32>
    %407 = arith.addf %404, %406 : vector<2x32xf32>
    %408 = math.tanh %407 : vector<2x32xf32>
    %c0_168 = arith.constant 0 : index
    %c0_169 = arith.constant 0 : index
    %409 = vector.load %arg19[%c0_168, %c0_169] : memref<1x32xf32, #tpu.memory_space<vmem>>, vector<1x32xf32>
    %410 = vector.broadcast %409 : vector<1x32xf32> to vector<2x32xf32>
    %411 = arith.mulf %408, %410 : vector<2x32xf32>
    %cst_170 = arith.constant dense<0.000000e+00> : vector<2xf32>
    %412 = vector.multi_reduction <add>, %411, %cst_170 [1] : vector<2x32xf32> to vector<2xf32>
    %413 = vector.shape_cast %412 : vector<2xf32> to vector<2x1xf32>
    %c0_171 = arith.constant 0 : index
    %c0_172 = arith.constant 0 : index
    %414 = vector.load %arg20[%c0_171, %c0_172] : memref<1x1xf32, #tpu.memory_space<vmem>>, vector<1x1xf32>
    %415 = vector.broadcast %414 : vector<1x1xf32> to vector<2x1xf32>
    %416 = arith.addf %413, %415 : vector<2x1xf32>
    %c0_173 = arith.constant 0 : index
    %c0_174 = arith.constant 0 : index
    %417 = vector.load %arg21[%c0_173, %c0_174] : memref<2x1xf32, #tpu.memory_space<vmem>>, vector<2x1xf32>
    tpu.vector_store %arg21[%c0_173, %c0_174], %416 {strides = array<i32>} : memref<2x1xf32, #tpu.memory_space<vmem>>, vector<2x1xf32>,
    return
  }
}

</mosaic_0001>

<llo_original>
// kernel: eq.8
$region0: #{eq.8}
  %s0 = inlined_call_operand.vmem [shape: s32[2,8], index: 0, kind: input, shape index: {}]
  %s1 = inlined_call_operand.vmem [shape: s32[16], index: 1, kind: output, shape index: {}]
  $region1: #{eq.8} parent=0
    #allocation0 [shape = 'u8[4096]{0}', space=vmem, size = 0x1000, scoped, tag = 'scoped mem for output reshape']
    #allocation1 [shape = 'u8[4096]{0}', space=vmem, size = 0x1000, scoped, tag = 'scoped mem for input reshape']
    %s3 = ssub.s32 4, 1
    %v4 = vld [vmem:[%s0] sm:%s3]
    %5 = vst [vmem:[#allocation1] sm:%s3] %v4
    %v6 = vld [vmem:[#allocation1] sm:$0x1]
    %vm7 = vcmask 64512
    %8 = vst.msk [vmem:[#allocation0] sm:$0x1] %vm7, %v6
    %s9 = scalar_lea.vmem [#allocation1], 1
    %v10 = vld [vmem:[%s9] sm:$0x1]
    %11 = vrot.lane.b32.xlu0 %v10, 8
    %v12 = vpop.permute.xlu0 %11
    %vm13 = vcmask 130112
    %14 = vst.msk [vmem:[#allocation0] sm:$0x1] %vm13, %v12
    %s16 = ssub.s32 2, 1
    %v17 = vld [vmem:[#allocation0] sm:%s16]
    %s19 = ssub.s32 2, 1
    %20 = vst [vmem:[%s1] sm:%s19] %v17

// kernel: forward.1
$region0: #{forward.1}
  #allocation0 [shape = 'u32[]', space=smem, size = 0x4, offset = 0x4, fixed_abs, tag = 'smem constant byte address 0x4 - core index']
  #allocation1 [shape = 'u32[72,128]{1,0:T(1,128)}', space=vmem, size = 0x9000, scoped, tag = 'internal scratch']
  #allocation2 [shape = 'f32[1,1]{1,0:T(1,128)S(1)}', space=vmem, size = 0x200, scoped, tag = 'scoped memory for forward.1']
  %s0 = inlined_call_operand.vmem [shape: s32[16,1], index: 0, kind: input, shape index: {}]
  %s1 = inlined_call_operand.vmem [shape: f32[16,16], index: 1, kind: input, shape index: {}]
  %s2 = inlined_call_operand.vmem [shape: bf16[128,32], index: 2, kind: input, shape index: {}]
  %s3 = inlined_call_operand.vmem [shape: f32[1,32], index: 3, kind: input, shape index: {}]
  %s4 = inlined_call_operand.vmem [shape: f32[1,32], index: 4, kind: input, shape index: {}]
  %s5 = inlined_call_operand.vmem [shape: bf16[2,32,96], index: 5, kind: input, shape index: {}]
  %s6 = inlined_call_operand.vmem [shape: f32[2,1,96], index: 6, kind: input, shape index: {}]
  %s7 = inlined_call_operand.vmem [shape: bf16[2,32,32], index: 7, kind: input, shape index: {}]
  %s8 = inlined_call_operand.vmem [shape: f32[2,1,32], index: 8, kind: input, shape index: {}]
  %s9 = inlined_call_operand.vmem [shape: f32[2,1,32], index: 9, kind: input, shape index: {}]
  %s10 = inlined_call_operand.vmem [shape: f32[2,1,32], index: 10, kind: input, shape index: {}]
  %s11 = inlined_call_operand.vmem [shape: bf16[2,32,64], index: 11, kind: input, shape index: {}]
  %s12 = inlined_call_operand.vmem [shape: f32[2,1,64], index: 12, kind: input, shape index: {}]
  %s13 = inlined_call_operand.vmem [shape: bf16[2,64,32], index: 13, kind: input, shape index: {}]
  %s14 = inlined_call_operand.vmem [shape: f32[2,1,32], index: 14, kind: input, shape index: {}]
  %s15 = inlined_call_operand.vmem [shape: f32[2,1,32], index: 15, kind: input, shape index: {}]
  %s16 = inlined_call_operand.vmem [shape: f32[2,1,32], index: 16, kind: input, shape index: {}]
  %s17 = inlined_call_operand.vmem [shape: bf16[32,32], index: 17, kind: input, shape index: {}]
  %s18 = inlined_call_operand.vmem [shape: f32[1,32], index: 18, kind: input, shape index: {}]
  %s19 = inlined_call_operand.vmem [shape: f32[1,32], index: 19, kind: input, shape index: {}]
  %s20 = inlined_call_operand.<no memory space> [shape: f32[1,1], index: 20, kind: input, shape index: {}]
  %s21 = inlined_call_operand.vmem [shape: f32[2,1], index: 21, kind: output, shape index: {}]
  %s22 = sld [smem:[#allocation0]]
  $region94: #{forward.1} parent=0
    _
  %s24 = ssub.s32 1, %s22
  %s25 = scalar_select 0, %s24, %s22
  %v26 = vstv %s20
  %27 = vst [vmem:[#allocation2] sm:$0x1] %v26
  // Predicated region
  $region2: #{forward.1} parent=0 // pred_check
    _
  $region3: #{forward.1} parent=0 // pred_check_branch
    %29 = sbr.rel (0) target = $region5
  $region4: #{forward.1} parent=0 // pred_region
    _
  $region5: #{forward.1} parent=0 // pred_fallthru
    _
  // Predicated region
  $region6: #{forward.1} parent=0 // pred_check
    _
  $region7: #{forward.1} parent=0 // pred_check_branch
    %31 = sbr.rel (0) target = $region9
  $region8: #{forward.1} parent=0 // pred_region
    _
  $region9: #{forward.1} parent=0 // pred_fallthru
    _
  // Predicated region
  $region10: #{forward.1} parent=0 // pred_check
    _
  $region11: #{forward.1} parent=0 // pred_check_branch
    %33 = sbr.rel (0) target = $region13
  $region12: #{forward.1} parent=0 // pred_region
    _
  $region13: #{forward.1} parent=0 // pred_fallthru
    _
  // Predicated region
  $region14: #{forward.1} parent=0 // pred_check
    _
  $region15: #{forward.1} parent=0 // pred_check_branch
    %35 = sbr.rel (0) target = $region17
  $region16: #{forward.1} parent=0 // pred_region
    _
  $region17: #{forward.1} parent=0 // pred_fallthru
    _
  // Predicated region
  $region18: #{forward.1} parent=0 // pred_check
    _
  $region19: #{forward.1} parent=0 // pred_check_branch
    %37 = sbr.rel (0) target = $region21
  $region20: #{forward.1} parent=0 // pred_region
    _
  $region21: #{forward.1} parent=0 // pred_fallthru
    _
  // Predicated region
  $region22: #{forward.1} parent=0 // pred_check
    _
  $region23: #{forward.1} parent=0 // pred_check_branch
    %39 = sbr.rel (0) target = $region25
  $region24: #{forward.1} parent=0 // pred_region
    _
  $region25: #{forward.1} parent=0 // pred_fallthru
    _
  // Predicated region
  $region26: #{forward.1} parent=0 // pred_check
    _
  $region27: #{forward.1} parent=0 // pred_check_branch
    %41 = sbr.rel (0) target = $region29
  $region28: #{forward.1} parent=0 // pred_region
    _
  $region29: #{forward.1} parent=0 // pred_fallthru
    _
  // Predicated region
  $region30: #{forward.1} parent=0 // pred_check
    _
  $region31: #{forward.1} parent=0 // pred_check_branch
    %43 = sbr.rel (0) target = $region33
  $region32: #{forward.1} parent=0 // pred_region
    _
  $region33: #{forward.1} parent=0 // pred_fallthru
    _
  // Predicated region
  $region34: #{forward.1} parent=0 // pred_check
    _
  $region35: #{forward.1} parent=0 // pred_check_branch
    %45 = sbr.rel (0) target = $region37
  $region36: #{forward.1} parent=0 // pred_region
    _
  $region37: #{forward.1} parent=0 // pred_fallthru
    _
  // Predicated region
  $region38: #{forward.1} parent=0 // pred_check
    _
  $region39: #{forward.1} parent=0 // pred_check_branch
    %47 = sbr.rel (0) target = $region41
  $region40: #{forward.1} parent=0 // pred_region
    _
  $region41: #{forward.1} parent=0 // pred_fallthru
    _
  // Predicated region
  $region42: #{forward.1} parent=0 // pred_check
    _
  $region43: #{forward.1} parent=0 // pred_check_branch
    %49 = sbr.rel (0) target = $region45
  $region44: #{forward.1} parent=0 // pred_region
    _
  $region45: #{forward.1} parent=0 // pred_fallthru
    _
  // Predicated region
  $region46: #{forward.1} parent=0 // pred_check
    _
  $region47: #{forward.1} parent=0 // pred_check_branch
    %51 = sbr.rel (0) target = $region49
  $region48: #{forward.1} parent=0 // pred_region
    _
  $region49: #{forward.1} parent=0 // pred_fallthru
    _
  // Predicated region
  $region50: #{forward.1} parent=0 // pred_check
    _
  $region51: #{forward.1} parent=0 // pred_check_branch
    %53 = sbr.rel (0) target = $region53
  $region52: #{forward.1} parent=0 // pred_region
    _
  $region53: #{forward.1} parent=0 // pred_fallthru
    _
  // Predicated region
  $region54: #{forward.1} parent=0 // pred_check
    _
  $region55: #{forward.1} parent=0 // pred_check_branch
    %55 = sbr.rel (0) target = $region57
  $region56: #{forward.1} parent=0 // pred_region
    _
  $region57: #{forward.1} parent=0 // pred_fallthru
    _
  // Predicated region
  $region58: #{forward.1} parent=0 // pred_check
    _
  $region59: #{forward.1} parent=0 // pred_check_branch
    %57 = sbr.rel (0) target = $region61
  $region60: #{forward.1} parent=0 // pred_region
    _
  $region61: #{forward.1} parent=0 // pred_fallthru
    _
  // Predicated region
  $region62: #{forward.1} parent=0 // pred_check
    _
  $region63: #{forward.1} parent=0 // pred_check_branch
    %59 = sbr.rel (0) target = $region65
  $region64: #{forward.1} parent=0 // pred_region
    _
  $region65: #{forward.1} parent=0 // pred_fallthru
    _
  // Predicated region
  $region66: #{forward.1} parent=0 // pred_check
    _
  $region67: #{forward.1} parent=0 // pred_check_branch
    %61 = sbr.rel (0) target = $region69
  $region68: #{forward.1} parent=0 // pred_region
    _
  $region69: #{forward.1} parent=0 // pred_fallthru
    _
  // Predicated region
  $region70: #{forward.1} parent=0 // pred_check
    _
  $region71: #{forward.1} parent=0 // pred_check_branch
    %63 = sbr.rel (0) target = $region73
  $region72: #{forward.1} parent=0 // pred_region
    _
  $region73: #{forward.1} parent=0 // pred_fallthru
    _
  // Predicated region
  $region74: #{forward.1} parent=0 // pred_check
    _
  $region75: #{forward.1} parent=0 // pred_check_branch
    %65 = sbr.rel (0) target = $region77
  $region76: #{forward.1} parent=0 // pred_region
    _
  $region77: #{forward.1} parent=0 // pred_fallthru
    _
  // Predicated region
  $region78: #{forward.1} parent=0 // pred_check
    _
  $region79: #{forward.1} parent=0 // pred_check_branch
    %67 = sbr.rel (0) target = $region81
  $region80: #{forward.1} parent=0 // pred_region
    _
  $region81: #{forward.1} parent=0 // pred_fallthru
    _
  // Predicated region
  $region82: #{forward.1} parent=0 // pred_check
    _
  $region83: #{forward.1} parent=0 // pred_check_branch
    %69 = sbr.rel (0) target = $region85
  $region84: #{forward.1} parent=0 // pred_region
    _
  $region85: #{forward.1} parent=0 // pred_fallthru
    _
  %v71 = vld [vmem:[%s0] sm:$0xff]
  %v72 = vld [vmem:[%s0 + $0x8] sm:$0xff]
  %v73 = vlaneseq
  %v74 = vand.u32 %v73, 127
  %75 = vset.pattern.permute.xlu0 0
  %76 = vperm.xlu0 %75, %v71
  %v77 = vpop.permute.xlu0 %76
  %78 = vset.pattern.permute.xlu0 0
  %79 = vperm.xlu0 %78, %v72
  %v80 = vpop.permute.xlu0 %79
  %vm81 = vcmp.eq.s32.totalorder %v77, %v74
  %vm82 = vcmp.eq.s32.totalorder %v80, %v74
  %v83 = vsel %vm81, 1.0, 0.0
  %v84 = vsel %vm82, 1.0, 0.0
  %v85 = vpack.c.bf16 %v84, %v83
  %v86 = vld [vmem:[%s2] sm:$0xf]
  %v87 = vld [vmem:[%s2 + $0x4] sm:$0xf]
  %v88 = vld [vmem:[%s2 + $0x8] sm:$0xf]
  %v89 = vld [vmem:[%s2 + $0xc] sm:$0xf]
  %v90 = vld [vmem:[%s2 + $0x10] sm:$0xf]
  %v91 = vld [vmem:[%s2 + $0x14] sm:$0xf]
  %v92 = vld [vmem:[%s2 + $0x18] sm:$0xf]
  %v93 = vld [vmem:[%s2 + $0x1c] sm:$0xf]
  %v94 = vld [vmem:[%s2 + $0x20] sm:$0xf]
  %v95 = vld [vmem:[%s2 + $0x24] sm:$0xf]
  %v96 = vld [vmem:[%s2 + $0x28] sm:$0xf]
  %v97 = vld [vmem:[%s2 + $0x2c] sm:$0xf]
  %v98 = vld [vmem:[%s2 + $0x30] sm:$0xf]
  %v99 = vld [vmem:[%s2 + $0x34] sm:$0xf]
  %v100 = vld [vmem:[%s2 + $0x38] sm:$0xf]
  %v101 = vld [vmem:[%s2 + $0x3c] sm:$0xf]
  %v118 = vunpack.c.l.b16 %v86
  %v119 = vunpack.c.l.b16 %v87
  %v120 = vunpack.c.l.b16 %v88
  %v121 = vunpack.c.l.b16 %v89
  %v122 = vunpack.c.l.b16 %v90
  %v123 = vunpack.c.l.b16 %v91
  %v124 = vunpack.c.l.b16 %v92
  %v125 = vunpack.c.l.b16 %v93
  %v126 = vunpack.c.l.b16 %v94
  %v127 = vunpack.c.l.b16 %v95
  %v128 = vunpack.c.l.b16 %v96
  %v129 = vunpack.c.l.b16 %v97
  %v130 = vunpack.c.l.b16 %v98
  %v131 = vunpack.c.l.b16 %v99
  %v132 = vunpack.c.l.b16 %v100
  %v133 = vunpack.c.l.b16 %v101
  %v134 = vpack.c.b16 %v119, %v118
  %v135 = vpack.c.b16 %v121, %v120
  %v136 = vpack.c.b16 %v123, %v122
  %v137 = vpack.c.b16 %v125, %v124
  %v138 = vpack.c.b16 %v127, %v126
  %v139 = vpack.c.b16 %v129, %v128
  %v140 = vpack.c.b16 %v131, %v130
  %v141 = vpack.c.b16 %v133, %v132
  %150 = vmatpush.bf16.msra.mxu0 %v141
  %151 = vmatpush.bf16.msra.mxu0 %v140
  %152 = vmatpush.bf16.msra.mxu0 %v139
  %153 = vmatpush.bf16.msra.mxu0 %v138
  %154 = vmatpush.bf16.msra.mxu0 %v137
  %155 = vmatpush.bf16.msra.mxu0 %v136
  %156 = vmatpush.bf16.msra.mxu0 %v135
  %157 = vmatpush.bf16.msra.mxu0 %v134
  %158 = vmatmul.bf16.gmra.mxu0 %v85
  %v159 = vpop.f32.mrf.mxu0
  %v160 = vadd.f32 0.0, %v159
  %v161 = vpop.f32.mrf.mxu0
  %v162 = vadd.f32 0.0, %v161
  %163 = vdwg.mxu0
  %v164 = vld [vmem:[%s3] sm:$0x1]
  %v165 = vld [vmem:[%s4] sm:$0x1]
  %vm166 = vcmask 261120
  %v167 = vsel %vm166, %v160, 0.0
  %168 = vadd.xlane.f32.xlu0 %v167
  %v169 = vpop.xlane.xlu0 %168
  %v170 = vsel %vm166, %v162, 0.0
  %171 = vadd.xlane.f32.xlu0 %v170
  %v172 = vpop.xlane.xlu0 %171
  %v173 = vrcp.pop 32.0
  %v174 = vmul.f32 32.0, %v173
  %v175 = vsub.f32 1.0, %v174
  %v176 = vmul.f32 %v173, %v175
  %v177 = vadd.f32 %v173, %v176
  %vm178 = vweird.f32 %v173
  %v179 = vsel %vm178, %v173, %v177
  %v180 = vmul.f32 %v169, %v179
  %v181 = vmul.f32 %v172, %v179
  %v182 = vsub.f32 %v160, %v180
  %v183 = vsub.f32 %v162, %v181
  %v184 = vmul.f32 %v182, %v182
  %v185 = vmul.f32 %v183, %v183
  %v186 = vsel %vm166, %v184, 0.0
  %187 = vadd.xlane.f32.xlu0 %v186
  %v188 = vpop.xlane.xlu0 %187
  %v189 = vsel %vm166, %v185, 0.0
  %190 = vadd.xlane.f32.xlu0 %v189
  %v191 = vpop.xlane.xlu0 %190
  %v192 = vmul.f32 %v188, %v179
  %v193 = vmul.f32 %v191, %v179
  %v194 = vadd.f32 %v192, 1e-07
  %v195 = vadd.f32 %v193, 1e-07
  %v196 = vrsqrt.pop %v194
  %v197 = vmul.f32 %v196, %v194
  %v198 = vmul.f32 %v197, %v196
  %v199 = vmul.f32 0.5, %v198
  %v200 = vsub.f32 1.5, %v199
  %v201 = vmul.f32 %v196, %v200
  %vm202 = vweird.f32 %v194
  %vm203 = vweird.f32 %v196
  %vm204 = vmor %vm202, %vm203
  %v205 = vsel %vm204, %v196, %v201
  %v206 = vrsqrt.pop %v195
  %v207 = vmul.f32 %v206, %v195
  %v208 = vmul.f32 %v207, %v206
  %v209 = vmul.f32 0.5, %v208
  %v210 = vsub.f32 1.5, %v209
  %v211 = vmul.f32 %v206, %v210
  %vm212 = vweird.f32 %v195
  %vm213 = vweird.f32 %v206
  %vm214 = vmor %vm212, %vm213
  %v215 = vsel %vm214, %v206, %v211
  %v216 = vmul.f32 %v182, %v205
  %v217 = vmul.f32 %v183, %v215
  %v219 = vperm.slane %v164, 0
  %v221 = vmul.f32 %v216, %v219
  %v222 = vmul.f32 %v217, %v219
  %v224 = vperm.slane %v165, 0
  %v226 = vadd.f32 %v221, %v224
  %v227 = vadd.f32 %v222, %v224
  %v228 = vld [vmem:[%s1] sm:$0xff]
  %v229 = vld [vmem:[%s1 + $0x8] sm:$0xff]
  %v230 = vpack.c.bf16 %v227, %v226
  %v231 = vld [vmem:[%s5] sm:$0xf]
  %v232 = vld [vmem:[%s5 + $0x4] sm:$0xf]
  %v233 = vld [vmem:[%s5 + $0x8] sm:$0xf]
  %v234 = vld [vmem:[%s5 + $0xc] sm:$0xf]
  %v235 = vld [vmem:[%s6] sm:$0x1]
  %v237 = vperm.slane %v235, 0
  %v243 = vunpack.c.l.b16 %v231
  %v244 = vunpack.c.l.b16 %v232
  %v245 = vunpack.c.l.b16 %v233
  %v246 = vunpack.c.l.b16 %v234
  %v247 = vpack.c.b16 %v244, %v243
  %v248 = vpack.c.b16 %v246, %v245
  %v252 = vsel %vm166, %v230, 0
  %254 = vmatpush.bf16.msra.mxu0 0
  %255 = vmatpush.bf16.msra.mxu0 0
  %256 = vmatpush.bf16.msra.mxu0 0
  %257 = vmatpush.bf16.msra.mxu0 0
  %258 = vmatpush.bf16.msra.mxu0 0
  %259 = vmatpush.bf16.msra.mxu0 0
  %260 = vmatpush.bf16.msra.mxu0 %v248
  %261 = vmatpush.bf16.msra.mxu0 %v247
  %262 = vmatmul.bf16.gmra.mxu0 %v252
  %v263 = vpop.f32.mrf.mxu0
  %v264 = vadd.f32 %v237, %v263
  %v265 = vpop.f32.mrf.mxu0
  %v266 = vadd.f32 %v237, %v265
  %267 = vdwg.mxu0
  %v268 = vpack.c.bf16 %v264, %v264
  %v269 = vpack.c.bf16 %v266, %v266
  %v272 = vunpack.c.l.b16 %v268
  %v273 = vunpack.c.l.b16 %v269
  %v274 = vpack.c.b16 %v273, %v272
  %275 = vrot.lane.b32.xlu0 %v274, 96
  %v276 = vpop.permute.xlu0 %275
  %vm277 = vcmask 64512
  %v279 = vsel %vm277, %v274, 0
  %v282 = vsel %vm277, %v276, 0
  %284 = vmatpush.bf16.xpose.msra.mxu0 0
  %285 = vmatpush.bf16.xpose.msra.mxu0 0
  %286 = vmatpush.bf16.xpose.msra.mxu0 0
  %287 = vmatpush.bf16.xpose.msra.mxu0 0
  %288 = vmatpush.bf16.xpose.msra.mxu0 0
  %289 = vmatpush.bf16.xpose.msra.mxu0 0
  %290 = vmatpush.bf16.xpose.msra.mxu0 0
  %291 = vmatpush.bf16.xpose.msra.mxu0 %v282
  %292 = vmatmul.bf16.gmra.mxu0 %v279
  %v293 = vpop.f32.mrf.mxu0
  %v294 = vadd.f32 0.0, %v293
  %v295 = vpop.f32.mrf.mxu0
  %v296 = vadd.f32 0.0, %v295
  %297 = vdwg.mxu0
  %v298 = vmul.f32 %v294, 0.35355338
  %v299 = vmul.f32 %v296, 0.35355338
  %v300 = vadd.f32 %v298, %v228
  %v301 = vadd.f32 %v299, %v229
  %vm302 = vcmask 130048
  %v303 = vsel %vm302, %v300, -inf
  %304 = vmax.xlane.f32.xlu0 %v303
  %v305 = vpop.xlane.xlu0 %304
  %v306 = vsel %vm302, %v301, -inf
  %307 = vmax.xlane.f32.xlu0 %v306
  %v308 = vpop.xlane.xlu0 %307
  %v309 = vsub.f32 %v300, %v305
  %v310 = vsub.f32 %v301, %v308
  %v311 = vmul.f32 %v309, 1.442695
  %v312 = vpow.pop %v311
  %v313 = vmul.f32 %v310, 1.442695
  %v314 = vpow.pop %v313
  %v315 = vsel %vm302, %v312, 0.0
  %316 = vadd.xlane.f32.xlu0 %v315
  %v317 = vpop.xlane.xlu0 %316
  %v318 = vsel %vm302, %v314, 0.0
  %319 = vadd.xlane.f32.xlu0 %v318
  %v320 = vpop.xlane.xlu0 %319
  %v321 = vrcp.pop %v317
  %v322 = vrcp.pop %v320
  %v323 = vmul.f32 %v312, %v321
  %v324 = vmul.f32 %v314, %v322
  %v325 = vpack.c.bf16 %v324, %v323
  %326 = vrot.lane.b32.xlu0 %v274, 64
  %v327 = vpop.permute.xlu0 %326
  %v330 = vsel %vm302, %v325, 0
  %332 = vmatpush.bf16.msra.mxu0 0
  %333 = vmatpush.bf16.msra.mxu0 0
  %334 = vmatpush.bf16.msra.mxu0 0
  %335 = vmatpush.bf16.msra.mxu0 0
  %336 = vmatpush.bf16.msra.mxu0 0
  %337 = vmatpush.bf16.msra.mxu0 0
  %338 = vmatpush.bf16.msra.mxu0 0
  %339 = vmatpush.bf16.msra.mxu0 %v327
  %340 = vmatmul.bf16.gmra.mxu0 %v330
  %v341 = vpop.f32.mrf.mxu0
  %v342 = vadd.f32 0.0, %v341
  %v343 = vpop.f32.mrf.mxu0
  %v344 = vadd.f32 0.0, %v343
  %345 = vdwg.mxu0
  %346 = vrot.lane.b32.xlu0 %v274, 120
  %v347 = vpop.permute.xlu0 %346
  %348 = vrot.lane.b32.xlu0 %v274, 88
  %v349 = vpop.permute.xlu0 %348
  %v351 = vsel %vm277, %v347, 0
  %v354 = vsel %vm277, %v349, 0
  %356 = vmatpush.bf16.xpose.msra.mxu0 0
  %357 = vmatpush.bf16.xpose.msra.mxu0 0
  %358 = vmatpush.bf16.xpose.msra.mxu0 0
  %359 = vmatpush.bf16.xpose.msra.mxu0 0
  %360 = vmatpush.bf16.xpose.msra.mxu0 0
  %361 = vmatpush.bf16.xpose.msra.mxu0 0
  %362 = vmatpush.bf16.xpose.msra.mxu0 0
  %363 = vmatpush.bf16.xpose.msra.mxu0 %v354
  %364 = vmatmul.bf16.gmra.mxu0 %v351
  %v365 = vpop.f32.mrf.mxu0
  %v366 = vadd.f32 0.0, %v365
  %v367 = vpop.f32.mrf.mxu0
  %v368 = vadd.f32 0.0, %v367
  %369 = vdwg.mxu0
  %v370 = vmul.f32 %v366, 0.35355338
  %v371 = vmul.f32 %v368, 0.35355338
  %v372 = vadd.f32 %v370, %v228
  %v373 = vadd.f32 %v371, %v229
  %v374 = vsel %vm302, %v372, -inf
  %375 = vmax.xlane.f32.xlu0 %v374
  %v376 = vpop.xlane.xlu0 %375
  %v377 = vsel %vm302, %v373, -inf
  %378 = vmax.xlane.f32.xlu0 %v377
  %v379 = vpop.xlane.xlu0 %378
  %v380 = vsub.f32 %v372, %v376
  %v381 = vsub.f32 %v373, %v379
  %v382 = vmul.f32 %v380, 1.442695
  %v383 = vpow.pop %v382
  %v384 = vmul.f32 %v381, 1.442695
  %v385 = vpow.pop %v384
  %v386 = vsel %vm302, %v383, 0.0
  %387 = vadd.xlane.f32.xlu0 %v386
  %v388 = vpop.xlane.xlu0 %387
  %v389 = vsel %vm302, %v385, 0.0
  %390 = vadd.xlane.f32.xlu0 %v389
  %v391 = vpop.xlane.xlu0 %390
  %v392 = vrcp.pop %v388
  %v393 = vrcp.pop %v391
  %v394 = vmul.f32 %v383, %v392
  %v395 = vmul.f32 %v385, %v393
  %v396 = vpack.c.bf16 %v395, %v394
  %397 = vrot.lane.b32.xlu0 %v274, 56
  %v398 = vpop.permute.xlu0 %397
  %v401 = vsel %vm302, %v396, 0
  %403 = vmatpush.bf16.msra.mxu0 0
  %404 = vmatpush.bf16.msra.mxu0 0
  %405 = vmatpush.bf16.msra.mxu0 0
  %406 = vmatpush.bf16.msra.mxu0 0
  %407 = vmatpush.bf16.msra.mxu0 0
  %408 = vmatpush.bf16.msra.mxu0 0
  %409 = vmatpush.bf16.msra.mxu0 0
  %410 = vmatpush.bf16.msra.mxu0 %v398
  %411 = vmatmul.bf16.gmra.mxu0 %v401
  %v412 = vpop.f32.mrf.mxu0
  %v413 = vadd.f32 0.0, %v412
  %v414 = vpop.f32.mrf.mxu0
  %v415 = vadd.f32 0.0, %v414
  %416 = vdwg.mxu0
  %417 = vrot.lane.b32.xlu0 %v274, 112
  %v418 = vpop.permute.xlu0 %417
  %419 = vrot.lane.b32.xlu0 %v274, 80
  %v420 = vpop.permute.xlu0 %419
  %v422 = vsel %vm277, %v418, 0
  %v425 = vsel %vm277, %v420, 0
  %427 = vmatpush.bf16.xpose.msra.mxu0 0
  %428 = vmatpush.bf16.xpose.msra.mxu0 0
  %429 = vmatpush.bf16.xpose.msra.mxu0 0
  %430 = vmatpush.bf16.xpose.msra.mxu0 0
  %431 = vmatpush.bf16.xpose.msra.mxu0 0
  %432 = vmatpush.bf16.xpose.msra.mxu0 0
  %433 = vmatpush.bf16.xpose.msra.mxu0 0
  %434 = vmatpush.bf16.xpose.msra.mxu0 %v425
  %435 = vmatmul.bf16.gmra.mxu0 %v422
  %v436 = vpop.f32.mrf.mxu0
  %v437 = vadd.f32 0.0, %v436
  %v438 = vpop.f32.mrf.mxu0
  %v439 = vadd.f32 0.0, %v438
  %440 = vdwg.mxu0
  %v441 = vmul.f32 %v437, 0.35355338
  %v442 = vmul.f32 %v439, 0.35355338
  %v443 = vadd.f32 %v441, %v228
  %v444 = vadd.f32 %v442, %v229
  %v445 = vsel %vm302, %v443, -inf
  %446 = vmax.xlane.f32.xlu0 %v445
  %v447 = vpop.xlane.xlu0 %446
  %v448 = vsel %vm302, %v444, -inf
  %449 = vmax.xlane.f32.xlu0 %v448
  %v450 = vpop.xlane.xlu0 %449
  %v451 = vsub.f32 %v443, %v447
  %v452 = vsub.f32 %v444, %v450
  %v453 = vmul.f32 %v451, 1.442695
  %v454 = vpow.pop %v453
  %v455 = vmul.f32 %v452, 1.442695
  %v456 = vpow.pop %v455
  %v457 = vsel %vm302, %v454, 0.0
  %458 = vadd.xlane.f32.xlu0 %v457
  %v459 = vpop.xlane.xlu0 %458
  %v460 = vsel %vm302, %v456, 0.0
  %461 = vadd.xlane.f32.xlu0 %v460
  %v462 = vpop.xlane.xlu0 %461
  %v463 = vrcp.pop %v459
  %v464 = vrcp.pop %v462
  %v465 = vmul.f32 %v454, %v463
  %v466 = vmul.f32 %v456, %v464
  %v467 = vpack.c.bf16 %v466, %v465
  %468 = vrot.lane.b32.xlu0 %v274, 48
  %v469 = vpop.permute.xlu0 %468
  %v472 = vsel %vm302, %v467, 0
  %474 = vmatpush.bf16.msra.mxu0 0
  %475 = vmatpush.bf16.msra.mxu0 0
  %476 = vmatpush.bf16.msra.mxu0 0
  %477 = vmatpush.bf16.msra.mxu0 0
  %478 = vmatpush.bf16.msra.mxu0 0
  %479 = vmatpush.bf16.msra.mxu0 0
  %480 = vmatpush.bf16.msra.mxu0 0
  %481 = vmatpush.bf16.msra.mxu0 %v469
  %482 = vmatmul.bf16.gmra.mxu0 %v472
  %v483 = vpop.f32.mrf.mxu0
  %v484 = vadd.f32 0.0, %v483
  %v485 = vpop.f32.mrf.mxu0
  %v486 = vadd.f32 0.0, %v485
  %487 = vdwg.mxu0
  %488 = vrot.lane.b32.xlu0 %v274, 104
  %v489 = vpop.permute.xlu0 %488
  %490 = vrot.lane.b32.xlu0 %v274, 72
  %v491 = vpop.permute.xlu0 %490
  %v493 = vsel %vm277, %v489, 0
  %v496 = vsel %vm277, %v491, 0
  %498 = vmatpush.bf16.xpose.msra.mxu0 0
  %499 = vmatpush.bf16.xpose.msra.mxu0 0
  %500 = vmatpush.bf16.xpose.msra.mxu0 0
  %501 = vmatpush.bf16.xpose.msra.mxu0 0
  %502 = vmatpush.bf16.xpose.msra.mxu0 0
  %503 = vmatpush.bf16.xpose.msra.mxu0 0
  %504 = vmatpush.bf16.xpose.msra.mxu0 0
  %505 = vmatpush.bf16.xpose.msra.mxu0 %v496
  %506 = vmatmul.bf16.gmra.mxu0 %v493
  %v507 = vpop.f32.mrf.mxu0
  %v508 = vadd.f32 0.0, %v507
  %v509 = vpop.f32.mrf.mxu0
  %v510 = vadd.f32 0.0, %v509
  %511 = vdwg.mxu0
  %v512 = vmul.f32 %v508, 0.35355338
  %v513 = vmul.f32 %v510, 0.35355338
  %v514 = vadd.f32 %v512, %v228
  %v515 = vadd.f32 %v513, %v229
  %v516 = vsel %vm302, %v514, -inf
  %517 = vmax.xlane.f32.xlu0 %v516
  %v518 = vpop.xlane.xlu0 %517
  %v519 = vsel %vm302, %v515, -inf
  %520 = vmax.xlane.f32.xlu0 %v519
  %v521 = vpop.xlane.xlu0 %520
  %v522 = vsub.f32 %v514, %v518
  %v523 = vsub.f32 %v515, %v521
  %v524 = vmul.f32 %v522, 1.442695
  %v525 = vpow.pop %v524
  %v526 = vmul.f32 %v523, 1.442695
  %v527 = vpow.pop %v526
  %v528 = vsel %vm302, %v525, 0.0
  %529 = vadd.xlane.f32.xlu0 %v528
  %v530 = vpop.xlane.xlu0 %529
  %v531 = vsel %vm302, %v527, 0.0
  %532 = vadd.xlane.f32.xlu0 %v531
  %v533 = vpop.xlane.xlu0 %532
  %v534 = vrcp.pop %v530
  %v535 = vrcp.pop %v533
  %v536 = vmul.f32 %v525, %v534
  %v537 = vmul.f32 %v527, %v535
  %v538 = vpack.c.bf16 %v537, %v536
  %539 = vrot.lane.b32.xlu0 %v274, 40
  %v540 = vpop.permute.xlu0 %539
  %v543 = vsel %vm302, %v538, 0
  %545 = vmatpush.bf16.msra.mxu0 0
  %546 = vmatpush.bf16.msra.mxu0 0
  %547 = vmatpush.bf16.msra.mxu0 0
  %548 = vmatpush.bf16.msra.mxu0 0
  %549 = vmatpush.bf16.msra.mxu0 0
  %550 = vmatpush.bf16.msra.mxu0 0
  %551 = vmatpush.bf16.msra.mxu0 0
  %552 = vmatpush.bf16.msra.mxu0 %v540
  %553 = vmatmul.bf16.gmra.mxu0 %v543
  %v554 = vpop.f32.mrf.mxu0
  %v555 = vadd.f32 0.0, %v554
  %v556 = vpop.f32.mrf.mxu0
  %v557 = vadd.f32 0.0, %v556
  %558 = vdwg.mxu0
  %561 = vrot.lane.b32.xlu0 %v413, 8
  %v562 = vpop.permute.xlu0 %561
  %563 = vrot.lane.b32.xlu0 %v415, 8
  %v564 = vpop.permute.xlu0 %563
  %569 = vrot.lane.b32.xlu0 %v484, 16
  %v570 = vpop.permute.xlu0 %569
  %571 = vrot.lane.b32.xlu0 %v486, 16
  %v572 = vpop.permute.xlu0 %571
  %577 = vrot.lane.b32.xlu0 %v555, 24
  %v578 = vpop.permute.xlu0 %577
  %579 = vrot.lane.b32.xlu0 %v557, 24
  %v580 = vpop.permute.xlu0 %579
  %v583 = vsel %vm277, %v342, %v562
  %v584 = vsel %vm277, %v344, %v564
  %v585 = vsel %vm302, %v583, %v570
  %v586 = vsel %vm302, %v584, %v572
  %vm587 = vcmask 195584
  %v588 = vsel %vm587, %v585, %v578
  %v589 = vsel %vm587, %v586, %v580
  %v590 = vpack.c.bf16 %v589, %v588
  %v591 = vld [vmem:[%s7] sm:$0xf]
  %v592 = vld [vmem:[%s7 + $0x4] sm:$0xf]
  %v593 = vld [vmem:[%s7 + $0x8] sm:$0xf]
  %v594 = vld [vmem:[%s7 + $0xc] sm:$0xf]
  %v595 = vld [vmem:[%s8] sm:$0x1]
  %v597 = vperm.slane %v595, 0
  %v603 = vunpack.c.l.b16 %v591
  %v604 = vunpack.c.l.b16 %v592
  %v605 = vunpack.c.l.b16 %v593
  %v606 = vunpack.c.l.b16 %v594
  %v607 = vpack.c.b16 %v604, %v603
  %v608 = vpack.c.b16 %v606, %v605
  %v612 = vsel %vm166, %v590, 0
  %614 = vmatpush.bf16.msra.mxu0 0
  %615 = vmatpush.bf16.msra.mxu0 0
  %616 = vmatpush.bf16.msra.mxu0 0
  %617 = vmatpush.bf16.msra.mxu0 0
  %618 = vmatpush.bf16.msra.mxu0 0
  %619 = vmatpush.bf16.msra.mxu0 0
  %620 = vmatpush.bf16.msra.mxu0 %v608
  %621 = vmatpush.bf16.msra.mxu0 %v607
  %622 = vmatmul.bf16.gmra.mxu0 %v612
  %v623 = vpop.f32.mrf.mxu0
  %v624 = vadd.f32 %v597, %v623
  %v625 = vpop.f32.mrf.mxu0
  %v626 = vadd.f32 %v597, %v625
  %627 = vdwg.mxu0
  %v628 = vadd.f32 %v226, %v624
  %v629 = vadd.f32 %v227, %v626
  %v630 = vld [vmem:[%s9] sm:$0x1]
  %v631 = vld [vmem:[%s10] sm:$0x1]
  %v632 = vsel %vm166, %v628, 0.0
  %633 = vadd.xlane.f32.xlu0 %v632
  %v634 = vpop.xlane.xlu0 %633
  %v635 = vsel %vm166, %v629, 0.0
  %636 = vadd.xlane.f32.xlu0 %v635
  %v637 = vpop.xlane.xlu0 %636
  %v638 = vmul.f32 %v634, %v179
  %v639 = vmul.f32 %v637, %v179
  %v640 = vsub.f32 %v628, %v638
  %v641 = vsub.f32 %v629, %v639
  %v642 = vmul.f32 %v640, %v640
  %v643 = vmul.f32 %v641, %v641
  %v644 = vsel %vm166, %v642, 0.0
  %645 = vadd.xlane.f32.xlu0 %v644
  %v646 = vpop.xlane.xlu0 %645
  %v647 = vsel %vm166, %v643, 0.0
  %648 = vadd.xlane.f32.xlu0 %v647
  %v649 = vpop.xlane.xlu0 %648
  %v650 = vmul.f32 %v646, %v179
  %v651 = vmul.f32 %v649, %v179
  %v652 = vadd.f32 %v650, 1e-07
  %v653 = vadd.f32 %v651, 1e-07
  %v654 = vrsqrt.pop %v652
  %v655 = vmul.f32 %v654, %v652
  %v656 = vmul.f32 %v655, %v654
  %v657 = vmul.f32 0.5, %v656
  %v658 = vsub.f32 1.5, %v657
  %v659 = vmul.f32 %v654, %v658
  %vm660 = vweird.f32 %v652
  %vm661 = vweird.f32 %v654
  %vm662 = vmor %vm660, %vm661
  %v663 = vsel %vm662, %v654, %v659
  %v664 = vrsqrt.pop %v653
  %v665 = vmul.f32 %v664, %v653
  %v666 = vmul.f32 %v665, %v664
  %v667 = vmul.f32 0.5, %v666
  %v668 = vsub.f32 1.5, %v667
  %v669 = vmul.f32 %v664, %v668
  %vm670 = vweird.f32 %v653
  %vm671 = vweird.f32 %v664
  %vm672 = vmor %vm670, %vm671
  %v673 = vsel %vm672, %v664, %v669
  %v674 = vmul.f32 %v640, %v663
  %v675 = vmul.f32 %v641, %v673
  %v677 = vperm.slane %v630, 0
  %v679 = vmul.f32 %v674, %v677
  %v680 = vmul.f32 %v675, %v677
  %v682 = vperm.slane %v631, 0
  %v684 = vadd.f32 %v679, %v682
  %v685 = vadd.f32 %v680, %v682
  %v686 = vpack.c.bf16 %v685, %v684
  %v687 = vld [vmem:[%s11] sm:$0xf]
  %v688 = vld [vmem:[%s11 + $0x4] sm:$0xf]
  %v689 = vld [vmem:[%s11 + $0x8] sm:$0xf]
  %v690 = vld [vmem:[%s11 + $0xc] sm:$0xf]
  %v691 = vld [vmem:[%s12] sm:$0x1]
  %v693 = vperm.slane %v691, 0
  %v699 = vunpack.c.l.b16 %v687
  %v700 = vunpack.c.l.b16 %v688
  %v701 = vunpack.c.l.b16 %v689
  %v702 = vunpack.c.l.b16 %v690
  %v703 = vpack.c.b16 %v700, %v699
  %v704 = vpack.c.b16 %v702, %v701
  %v708 = vsel %vm166, %v686, 0
  %710 = vmatpush.bf16.msra.mxu0 0
  %711 = vmatpush.bf16.msra.mxu0 0
  %712 = vmatpush.bf16.msra.mxu0 0
  %713 = vmatpush.bf16.msra.mxu0 0
  %714 = vmatpush.bf16.msra.mxu0 0
  %715 = vmatpush.bf16.msra.mxu0 0
  %716 = vmatpush.bf16.msra.mxu0 %v704
  %717 = vmatpush.bf16.msra.mxu0 %v703
  %718 = vmatmul.bf16.gmra.mxu0 %v708
  %v719 = vpop.f32.mrf.mxu0
  %v720 = vadd.f32 %v693, %v719
  %v721 = vpop.f32.mrf.mxu0
  %v722 = vadd.f32 %v693, %v721
  %723 = vdwg.mxu0
  %v724 = vmul.f32 %v720, %v720
  %v725 = vmul.f32 %v722, %v722
  %v726 = vmul.f32 %v720, %v724
  %v727 = vmul.f32 %v722, %v725
  %v728 = vmul.f32 %v726, 0.044715
  %v729 = vmul.f32 %v727, 0.044715
  %v730 = vadd.f32 %v720, %v728
  %v731 = vadd.f32 %v722, %v729
  %v732 = vmul.f32 %v730, 0.7978846
  %v733 = vmul.f32 %v731, 0.7978846
  %v734 = vtanh.pop %v732
  %v735 = vtanh.pop %v733
  %v736 = vadd.f32 %v734, 1.0
  %v737 = vadd.f32 %v735, 1.0
  %v738 = vmul.f32 %v736, 0.5
  %v739 = vmul.f32 %v737, 0.5
  %v740 = vmul.f32 %v720, %v738
  %v741 = vmul.f32 %v722, %v739
  %v742 = vpack.c.bf16 %v741, %v740
  %v743 = vld [vmem:[%s13] sm:$0xf]
  %v744 = vld [vmem:[%s13 + $0x4] sm:$0xf]
  %v745 = vld [vmem:[%s13 + $0x8] sm:$0xf]
  %v746 = vld [vmem:[%s13 + $0xc] sm:$0xf]
  %v747 = vld [vmem:[%s13 + $0x10] sm:$0xf]
  %v748 = vld [vmem:[%s13 + $0x14] sm:$0xf]
  %v749 = vld [vmem:[%s13 + $0x18] sm:$0xf]
  %v750 = vld [vmem:[%s13 + $0x1c] sm:$0xf]
  %v751 = vld [vmem:[%s14] sm:$0x1]
  %v753 = vperm.slane %v751, 0
  %v763 = vunpack.c.l.b16 %v743
  %v764 = vunpack.c.l.b16 %v744
  %v765 = vunpack.c.l.b16 %v745
  %v766 = vunpack.c.l.b16 %v746
  %v767 = vunpack.c.l.b16 %v747
  %v768 = vunpack.c.l.b16 %v748
  %v769 = vunpack.c.l.b16 %v749
  %v770 = vunpack.c.l.b16 %v750
  %v771 = vpack.c.b16 %v764, %v763
  %v772 = vpack.c.b16 %v766, %v765
  %v773 = vpack.c.b16 %v768, %v767
  %v774 = vpack.c.b16 %v770, %v769
  %vm779 = vcmask 523264
  %v781 = vsel %vm779, %v742, 0
  %783 = vmatpush.bf16.msra.mxu0 0
  %784 = vmatpush.bf16.msra.mxu0 0
  %785 = vmatpush.bf16.msra.mxu0 0
  %786 = vmatpush.bf16.msra.mxu0 0
  %787 = vmatpush.bf16.msra.mxu0 %v774
  %788 = vmatpush.bf16.msra.mxu0 %v773
  %789 = vmatpush.bf16.msra.mxu0 %v772
  %790 = vmatpush.bf16.msra.mxu0 %v771
  %791 = vmatmul.bf16.gmra.mxu0 %v781
  %v792 = vpop.f32.mrf.mxu0
  %v793 = vadd.f32 %v753, %v792
  %v794 = vpop.f32.mrf.mxu0
  %v795 = vadd.f32 %v753, %v794
  %796 = vdwg.mxu0
  %v797 = vadd.f32 %v684, %v793
  %v798 = vadd.f32 %v685, %v795
  %v799 = vld [vmem:[%s15] sm:$0x1]
  %v800 = vld [vmem:[%s16] sm:$0x1]
  %v801 = vsel %vm166, %v797, 0.0
  %802 = vadd.xlane.f32.xlu0 %v801
  %v803 = vpop.xlane.xlu0 %802
  %v804 = vsel %vm166, %v798, 0.0
  %805 = vadd.xlane.f32.xlu0 %v804
  %v806 = vpop.xlane.xlu0 %805
  %v807 = vmul.f32 %v803, %v179
  %v808 = vmul.f32 %v806, %v179
  %v809 = vsub.f32 %v797, %v807
  %v810 = vsub.f32 %v798, %v808
  %v811 = vmul.f32 %v809, %v809
  %v812 = vmul.f32 %v810, %v810
  %v813 = vsel %vm166, %v811, 0.0
  %814 = vadd.xlane.f32.xlu0 %v813
  %v815 = vpop.xlane.xlu0 %814
  %v816 = vsel %vm166, %v812, 0.0
  %817 = vadd.xlane.f32.xlu0 %v816
  %v818 = vpop.xlane.xlu0 %817
  %v819 = vmul.f32 %v815, %v179
  %v820 = vmul.f32 %v818, %v179
  %v821 = vadd.f32 %v819, 1e-07
  %v822 = vadd.f32 %v820, 1e-07
  %v823 = vrsqrt.pop %v821
  %v824 = vmul.f32 %v823, %v821
  %v825 = vmul.f32 %v824, %v823
  %v826 = vmul.f32 0.5, %v825
  %v827 = vsub.f32 1.5, %v826
  %v828 = vmul.f32 %v823, %v827
  %vm829 = vweird.f32 %v821
  %vm830 = vweird.f32 %v823
  %vm831 = vmor %vm829, %vm830
  %v832 = vsel %vm831, %v823, %v828
  %v833 = vrsqrt.pop %v822
  %v834 = vmul.f32 %v833, %v822
  %v835 = vmul.f32 %v834, %v833
  %v836 = vmul.f32 0.5, %v835
  %v837 = vsub.f32 1.5, %v836
  %v838 = vmul.f32 %v833, %v837
  %vm839 = vweird.f32 %v822
  %vm840 = vweird.f32 %v833
  %vm841 = vmor %vm839, %vm840
  %v842 = vsel %vm841, %v833, %v838
  %v843 = vmul.f32 %v809, %v832
  %v844 = vmul.f32 %v810, %v842
  %v846 = vperm.slane %v799, 0
  %v848 = vmul.f32 %v843, %v846
  %v849 = vmul.f32 %v844, %v846
  %v851 = vperm.slane %v800, 0
  %v853 = vadd.f32 %v848, %v851
  %v854 = vadd.f32 %v849, %v851
  %v855 = vpack.c.bf16 %v854, %v853
  %s856 = scalar_lea.vmem %s5, 16
  %v857 = vld [vmem:[%s856] sm:$0xf]
  %v858 = vld [vmem:[%s856 + $0x4] sm:$0xf]
  %v859 = vld [vmem:[%s856 + $0x8] sm:$0xf]
  %v860 = vld [vmem:[%s856 + $0xc] sm:$0xf]
  %s861 = scalar_lea.vmem %s6, 1
  %v862 = vld [vmem:[%s861] sm:$0x1]
  %v864 = vperm.slane %v862, 0
  %v870 = vunpack.c.l.b16 %v857
  %v871 = vunpack.c.l.b16 %v858
  %v872 = vunpack.c.l.b16 %v859
  %v873 = vunpack.c.l.b16 %v860
  %v874 = vpack.c.b16 %v871, %v870
  %v875 = vpack.c.b16 %v873, %v872
  %v879 = vsel %vm166, %v855, 0
  %881 = vmatpush.bf16.msra.mxu0 0
  %882 = vmatpush.bf16.msra.mxu0 0
  %883 = vmatpush.bf16.msra.mxu0 0
  %884 = vmatpush.bf16.msra.mxu0 0
  %885 = vmatpush.bf16.msra.mxu0 0
  %886 = vmatpush.bf16.msra.mxu0 0
  %887 = vmatpush.bf16.msra.mxu0 %v875
  %888 = vmatpush.bf16.msra.mxu0 %v874
  %889 = vmatmul.bf16.gmra.mxu0 %v879
  %v890 = vpop.f32.mrf.mxu0
  %v891 = vadd.f32 %v864, %v890
  %v892 = vpop.f32.mrf.mxu0
  %v893 = vadd.f32 %v864, %v892
  %894 = vdwg.mxu0
  %v895 = vpack.c.bf16 %v891, %v891
  %v896 = vpack.c.bf16 %v893, %v893
  %v899 = vunpack.c.l.b16 %v895
  %v900 = vunpack.c.l.b16 %v896
  %v901 = vpack.c.b16 %v900, %v899
  %902 = vrot.lane.b32.xlu0 %v901, 96
  %v903 = vpop.permute.xlu0 %902
  %v905 = vsel %vm277, %v901, 0
  %v908 = vsel %vm277, %v903, 0
  %910 = vmatpush.bf16.xpose.msra.mxu0 0
  %911 = vmatpush.bf16.xpose.msra.mxu0 0
  %912 = vmatpush.bf16.xpose.msra.mxu0 0
  %913 = vmatpush.bf16.xpose.msra.mxu0 0
  %914 = vmatpush.bf16.xpose.msra.mxu0 0
  %915 = vmatpush.bf16.xpose.msra.mxu0 0
  %916 = vmatpush.bf16.xpose.msra.mxu0 0
  %917 = vmatpush.bf16.xpose.msra.mxu0 %v908
  %918 = vmatmul.bf16.gmra.mxu0 %v905
  %v919 = vpop.f32.mrf.mxu0
  %v920 = vadd.f32 0.0, %v919
  %v921 = vpop.f32.mrf.mxu0
  %v922 = vadd.f32 0.0, %v921
  %923 = vdwg.mxu0
  %v924 = vmul.f32 %v920, 0.35355338
  %v925 = vmul.f32 %v922, 0.35355338
  %v926 = vadd.f32 %v924, %v228
  %v927 = vadd.f32 %v925, %v229
  %v928 = vsel %vm302, %v926, -inf
  %929 = vmax.xlane.f32.xlu0 %v928
  %v930 = vpop.xlane.xlu0 %929
  %v931 = vsel %vm302, %v927, -inf
  %932 = vmax.xlane.f32.xlu0 %v931
  %v933 = vpop.xlane.xlu0 %932
  %v934 = vsub.f32 %v926, %v930
  %v935 = vsub.f32 %v927, %v933
  %v936 = vmul.f32 %v934, 1.442695
  %v937 = vpow.pop %v936
  %v938 = vmul.f32 %v935, 1.442695
  %v939 = vpow.pop %v938
  %v940 = vsel %vm302, %v937, 0.0
  %941 = vadd.xlane.f32.xlu0 %v940
  %v942 = vpop.xlane.xlu0 %941
  %v943 = vsel %vm302, %v939, 0.0
  %944 = vadd.xlane.f32.xlu0 %v943
  %v945 = vpop.xlane.xlu0 %944
  %v946 = vrcp.pop %v942
  %v947 = vrcp.pop %v945
  %v948 = vmul.f32 %v937, %v946
  %v949 = vmul.f32 %v939, %v947
  %v950 = vpack.c.bf16 %v949, %v948
  %951 = vrot.lane.b32.xlu0 %v901, 64
  %v952 = vpop.permute.xlu0 %951
  %v955 = vsel %vm302, %v950, 0
  %957 = vmatpush.bf16.msra.mxu0 0
  %958 = vmatpush.bf16.msra.mxu0 0
  %959 = vmatpush.bf16.msra.mxu0 0
  %960 = vmatpush.bf16.msra.mxu0 0
  %961 = vmatpush.bf16.msra.mxu0 0
  %962 = vmatpush.bf16.msra.mxu0 0
  %963 = vmatpush.bf16.msra.mxu0 0
  %964 = vmatpush.bf16.msra.mxu0 %v952
  %965 = vmatmul.bf16.gmra.mxu0 %v955
  %v966 = vpop.f32.mrf.mxu0
  %v967 = vadd.f32 0.0, %v966
  %v968 = vpop.f32.mrf.mxu0
  %v969 = vadd.f32 0.0, %v968
  %970 = vdwg.mxu0
  %971 = vrot.lane.b32.xlu0 %v901, 120
  %v972 = vpop.permute.xlu0 %971
  %973 = vrot.lane.b32.xlu0 %v901, 88
  %v974 = vpop.permute.xlu0 %973
  %v976 = vsel %vm277, %v972, 0
  %v979 = vsel %vm277, %v974, 0
  %981 = vmatpush.bf16.xpose.msra.mxu0 0
  %982 = vmatpush.bf16.xpose.msra.mxu0 0
  %983 = vmatpush.bf16.xpose.msra.mxu0 0
  %984 = vmatpush.bf16.xpose.msra.mxu0 0
  %985 = vmatpush.bf16.xpose.msra.mxu0 0
  %986 = vmatpush.bf16.xpose.msra.mxu0 0
  %987 = vmatpush.bf16.xpose.msra.mxu0 0
  %988 = vmatpush.bf16.xpose.msra.mxu0 %v979
  %989 = vmatmul.bf16.gmra.mxu0 %v976
  %v990 = vpop.f32.mrf.mxu0
  %v991 = vadd.f32 0.0, %v990
  %v992 = vpop.f32.mrf.mxu0
  %v993 = vadd.f32 0.0, %v992
  %994 = vdwg.mxu0
  %v995 = vmul.f32 %v991, 0.35355338
  %v996 = vmul.f32 %v993, 0.35355338
  %v997 = vadd.f32 %v995, %v228
  %v998 = vadd.f32 %v996, %v229
  %v999 = vsel %vm302, %v997, -inf
  %1000 = vmax.xlane.f32.xlu0 %v999
  %v1001 = vpop.xlane.xlu0 %1000
  %v1002 = vsel %vm302, %v998, -inf
  %1003 = vmax.xlane.f32.xlu0 %v1002
  %v1004 = vpop.xlane.xlu0 %1003
  %v1005 = vsub.f32 %v997, %v1001
  %v1006 = vsub.f32 %v998, %v1004
  %v1007 = vmul.f32 %v1005, 1.442695
  %v1008 = vpow.pop %v1007
  %v1009 = vmul.f32 %v1006, 1.442695
  %v1010 = vpow.pop %v1009
  %v1011 = vsel %vm302, %v1008, 0.0
  %1012 = vadd.xlane.f32.xlu0 %v1011
  %v1013 = vpop.xlane.xlu0 %1012
  %v1014 = vsel %vm302, %v1010, 0.0
  %1015 = vadd.xlane.f32.xlu0 %v1014
  %v1016 = vpop.xlane.xlu0 %1015
  %v1017 = vrcp.pop %v1013
  %v1018 = vrcp.pop %v1016
  %v1019 = vmul.f32 %v1008, %v1017
  %v1020 = vmul.f32 %v1010, %v1018
  %v1021 = vpack.c.bf16 %v1020, %v1019
  %1022 = vrot.lane.b32.xlu0 %v901, 56
  %v1023 = vpop.permute.xlu0 %1022
  %v1026 = vsel %vm302, %v1021, 0
  %1028 = vmatpush.bf16.msra.mxu0 0
  %1029 = vmatpush.bf16.msra.mxu0 0
  %1030 = vmatpush.bf16.msra.mxu0 0
  %1031 = vmatpush.bf16.msra.mxu0 0
  %1032 = vmatpush.bf16.msra.mxu0 0
  %1033 = vmatpush.bf16.msra.mxu0 0
  %1034 = vmatpush.bf16.msra.mxu0 0
  %1035 = vmatpush.bf16.msra.mxu0 %v1023
  %1036 = vmatmul.bf16.gmra.mxu0 %v1026
  %v1037 = vpop.f32.mrf.mxu0
  %v1038 = vadd.f32 0.0, %v1037
  %v1039 = vpop.f32.mrf.mxu0
  %v1040 = vadd.f32 0.0, %v1039
  %1041 = vdwg.mxu0
  %1042 = vrot.lane.b32.xlu0 %v901, 112
  %v1043 = vpop.permute.xlu0 %1042
  %1044 = vrot.lane.b32.xlu0 %v901, 80
  %v1045 = vpop.permute.xlu0 %1044
  %v1047 = vsel %vm277, %v1043, 0
  %v1050 = vsel %vm277, %v1045, 0
  %1052 = vmatpush.bf16.xpose.msra.mxu0 0
  %1053 = vmatpush.bf16.xpose.msra.mxu0 0
  %1054 = vmatpush.bf16.xpose.msra.mxu0 0
  %1055 = vmatpush.bf16.xpose.msra.mxu0 0
  %1056 = vmatpush.bf16.xpose.msra.mxu0 0
  %1057 = vmatpush.bf16.xpose.msra.mxu0 0
  %1058 = vmatpush.bf16.xpose.msra.mxu0 0
  %1059 = vmatpush.bf16.xpose.msra.mxu0 %v1050
  %1060 = vmatmul.bf16.gmra.mxu0 %v1047
  %v1061 = vpop.f32.mrf.mxu0
  %v1062 = vadd.f32 0.0, %v1061
  %v1063 = vpop.f32.mrf.mxu0
  %v1064 = vadd.f32 0.0, %v1063
  %1065 = vdwg.mxu0
  %v1066 = vmul.f32 %v1062, 0.35355338
  %v1067 = vmul.f32 %v1064, 0.35355338
  %v1068 = vadd.f32 %v1066, %v228
  %v1069 = vadd.f32 %v1067, %v229
  %v1070 = vsel %vm302, %v1068, -inf
  %1071 = vmax.xlane.f32.xlu0 %v1070
  %v1072 = vpop.xlane.xlu0 %1071
  %v1073 = vsel %vm302, %v1069, -inf
  %1074 = vmax.xlane.f32.xlu0 %v1073
  %v1075 = vpop.xlane.xlu0 %1074
  %v1076 = vsub.f32 %v1068, %v1072
  %v1077 = vsub.f32 %v1069, %v1075
  %v1078 = vmul.f32 %v1076, 1.442695
  %v1079 = vpow.pop %v1078
  %v1080 = vmul.f32 %v1077, 1.442695
  %v1081 = vpow.pop %v1080
  %v1082 = vsel %vm302, %v1079, 0.0
  %1083 = vadd.xlane.f32.xlu0 %v1082
  %v1084 = vpop.xlane.xlu0 %1083
  %v1085 = vsel %vm302, %v1081, 0.0
  %1086 = vadd.xlane.f32.xlu0 %v1085
  %v1087 = vpop.xlane.xlu0 %1086
  %v1088 = vrcp.pop %v1084
  %v1089 = vrcp.pop %v1087
  %v1090 = vmul.f32 %v1079, %v1088
  %v1091 = vmul.f32 %v1081, %v1089
  %v1092 = vpack.c.bf16 %v1091, %v1090
  %1093 = vrot.lane.b32.xlu0 %v901, 48
  %v1094 = vpop.permute.xlu0 %1093
  %v1097 = vsel %vm302, %v1092, 0
  %1099 = vmatpush.bf16.msra.mxu0 0
  %1100 = vmatpush.bf16.msra.mxu0 0
  %1101 = vmatpush.bf16.msra.mxu0 0
  %1102 = vmatpush.bf16.msra.mxu0 0
  %1103 = vmatpush.bf16.msra.mxu0 0
  %1104 = vmatpush.bf16.msra.mxu0 0
  %1105 = vmatpush.bf16.msra.mxu0 0
  %1106 = vmatpush.bf16.msra.mxu0 %v1094
  %1107 = vmatmul.bf16.gmra.mxu0 %v1097
  %v1108 = vpop.f32.mrf.mxu0
  %v1109 = vadd.f32 0.0, %v1108
  %v1110 = vpop.f32.mrf.mxu0
  %v1111 = vadd.f32 0.0, %v1110
  %1112 = vdwg.mxu0
  %1113 = vrot.lane.b32.xlu0 %v901, 104
  %v1114 = vpop.permute.xlu0 %1113
  %1115 = vrot.lane.b32.xlu0 %v901, 72
  %v1116 = vpop.permute.xlu0 %1115
  %v1118 = vsel %vm277, %v1114, 0
  %v1121 = vsel %vm277, %v1116, 0
  %1123 = vmatpush.bf16.xpose.msra.mxu0 0
  %1124 = vmatpush.bf16.xpose.msra.mxu0 0
  %1125 = vmatpush.bf16.xpose.msra.mxu0 0
  %1126 = vmatpush.bf16.xpose.msra.mxu0 0
  %1127 = vmatpush.bf16.xpose.msra.mxu0 0
  %1128 = vmatpush.bf16.xpose.msra.mxu0 0
  %1129 = vmatpush.bf16.xpose.msra.mxu0 0
  %1130 = vmatpush.bf16.xpose.msra.mxu0 %v1121
  %1131 = vmatmul.bf16.gmra.mxu0 %v1118
  %v1132 = vpop.f32.mrf.mxu0
  %v1133 = vadd.f32 0.0, %v1132
  %v1134 = vpop.f32.mrf.mxu0
  %v1135 = vadd.f32 0.0, %v1134
  %1136 = vdwg.mxu0
  %v1137 = vmul.f32 %v1133, 0.35355338
  %v1138 = vmul.f32 %v1135, 0.35355338
  %v1139 = vadd.f32 %v1137, %v228
  %v1140 = vadd.f32 %v1138, %v229
  %v1141 = vsel %vm302, %v1139, -inf
  %1142 = vmax.xlane.f32.xlu0 %v1141
  %v1143 = vpop.xlane.xlu0 %1142
  %v1144 = vsel %vm302, %v1140, -inf
  %1145 = vmax.xlane.f32.xlu0 %v1144
  %v1146 = vpop.xlane.xlu0 %1145
  %v1147 = vsub.f32 %v1139, %v1143
  %v1148 = vsub.f32 %v1140, %v1146
  %v1149 = vmul.f32 %v1147, 1.442695
  %v1150 = vpow.pop %v1149
  %v1151 = vmul.f32 %v1148, 1.442695
  %v1152 = vpow.pop %v1151
  %v1153 = vsel %vm302, %v1150, 0.0
  %1154 = vadd.xlane.f32.xlu0 %v1153
  %v1155 = vpop.xlane.xlu0 %1154
  %v1156 = vsel %vm302, %v1152, 0.0
  %1157 = vadd.xlane.f32.xlu0 %v1156
  %v1158 = vpop.xlane.xlu0 %1157
  %v1159 = vrcp.pop %v1155
  %v1160 = vrcp.pop %v1158
  %v1161 = vmul.f32 %v1150, %v1159
  %v1162 = vmul.f32 %v1152, %v1160
  %v1163 = vpack.c.bf16 %v1162, %v1161
  %1164 = vrot.lane.b32.xlu0 %v901, 40
  %v1165 = vpop.permute.xlu0 %1164
  %v1168 = vsel %vm302, %v1163, 0
  %1170 = vmatpush.bf16.msra.mxu0 0
  %1171 = vmatpush.bf16.msra.mxu0 0
  %1172 = vmatpush.bf16.msra.mxu0 0
  %1173 = vmatpush.bf16.msra.mxu0 0
  %1174 = vmatpush.bf16.msra.mxu0 0
  %1175 = vmatpush.bf16.msra.mxu0 0
  %1176 = vmatpush.bf16.msra.mxu0 0
  %1177 = vmatpush.bf16.msra.mxu0 %v1165
  %1178 = vmatmul.bf16.gmra.mxu0 %v1168
  %v1179 = vpop.f32.mrf.mxu0
  %v1180 = vadd.f32 0.0, %v1179
  %v1181 = vpop.f32.mrf.mxu0
  %v1182 = vadd.f32 0.0, %v1181
  %1183 = vdwg.mxu0
  %1186 = vrot.lane.b32.xlu0 %v1038, 8
  %v1187 = vpop.permute.xlu0 %1186
  %1188 = vrot.lane.b32.xlu0 %v1040, 8
  %v1189 = vpop.permute.xlu0 %1188
  %1194 = vrot.lane.b32.xlu0 %v1109, 16
  %v1195 = vpop.permute.xlu0 %1194
  %1196 = vrot.lane.b32.xlu0 %v1111, 16
  %v1197 = vpop.permute.xlu0 %1196
  %1202 = vrot.lane.b32.xlu0 %v1180, 24
  %v1203 = vpop.permute.xlu0 %1202
  %1204 = vrot.lane.b32.xlu0 %v1182, 24
  %v1205 = vpop.permute.xlu0 %1204
  %v1208 = vsel %vm277, %v967, %v1187
  %v1209 = vsel %vm277, %v969, %v1189
  %v1210 = vsel %vm302, %v1208, %v1195
  %v1211 = vsel %vm302, %v1209, %v1197
  %v1212 = vsel %vm587, %v1210, %v1203
  %v1213 = vsel %vm587, %v1211, %v1205
  %v1214 = vpack.c.bf16 %v1213, %v1212
  %s1215 = scalar_lea.vmem %s7, 16
  %v1216 = vld [vmem:[%s1215] sm:$0xf]
  %v1217 = vld [vmem:[%s1215 + $0x4] sm:$0xf]
  %v1218 = vld [vmem:[%s1215 + $0x8] sm:$0xf]
  %v1219 = vld [vmem:[%s1215 + $0xc] sm:$0xf]
  %s1220 = scalar_lea.vmem %s8, 1
  %v1221 = vld [vmem:[%s1220] sm:$0x1]
  %v1223 = vperm.slane %v1221, 0
  %v1229 = vunpack.c.l.b16 %v1216
  %v1230 = vunpack.c.l.b16 %v1217
  %v1231 = vunpack.c.l.b16 %v1218
  %v1232 = vunpack.c.l.b16 %v1219
  %v1233 = vpack.c.b16 %v1230, %v1229
  %v1234 = vpack.c.b16 %v1232, %v1231
  %v1238 = vsel %vm166, %v1214, 0
  %1240 = vmatpush.bf16.msra.mxu0 0
  %1241 = vmatpush.bf16.msra.mxu0 0
  %1242 = vmatpush.bf16.msra.mxu0 0
  %1243 = vmatpush.bf16.msra.mxu0 0
  %1244 = vmatpush.bf16.msra.mxu0 0
  %1245 = vmatpush.bf16.msra.mxu0 0
  %1246 = vmatpush.bf16.msra.mxu0 %v1234
  %1247 = vmatpush.bf16.msra.mxu0 %v1233
  %1248 = vmatmul.bf16.gmra.mxu0 %v1238
  %v1249 = vpop.f32.mrf.mxu0
  %v1250 = vadd.f32 %v1223, %v1249
  %v1251 = vpop.f32.mrf.mxu0
  %v1252 = vadd.f32 %v1223, %v1251
  %1253 = vdwg.mxu0
  %v1254 = vadd.f32 %v853, %v1250
  %v1255 = vadd.f32 %v854, %v1252
  %s1256 = scalar_lea.vmem %s9, 1
  %v1257 = vld [vmem:[%s1256] sm:$0x1]
  %s1258 = scalar_lea.vmem %s10, 1
  %v1259 = vld [vmem:[%s1258] sm:$0x1]
  %v1260 = vsel %vm166, %v1254, 0.0
  %1261 = vadd.xlane.f32.xlu0 %v1260
  %v1262 = vpop.xlane.xlu0 %1261
  %v1263 = vsel %vm166, %v1255, 0.0
  %1264 = vadd.xlane.f32.xlu0 %v1263
  %v1265 = vpop.xlane.xlu0 %1264
  %v1266 = vmul.f32 %v1262, %v179
  %v1267 = vmul.f32 %v1265, %v179
  %v1268 = vsub.f32 %v1254, %v1266
  %v1269 = vsub.f32 %v1255, %v1267
  %v1270 = vmul.f32 %v1268, %v1268
  %v1271 = vmul.f32 %v1269, %v1269
  %v1272 = vsel %vm166, %v1270, 0.0
  %1273 = vadd.xlane.f32.xlu0 %v1272
  %v1274 = vpop.xlane.xlu0 %1273
  %v1275 = vsel %vm166, %v1271, 0.0
  %1276 = vadd.xlane.f32.xlu0 %v1275
  %v1277 = vpop.xlane.xlu0 %1276
  %v1278 = vmul.f32 %v1274, %v179
  %v1279 = vmul.f32 %v1277, %v179
  %v1280 = vadd.f32 %v1278, 1e-07
  %v1281 = vadd.f32 %v1279, 1e-07
  %v1282 = vrsqrt.pop %v1280
  %v1283 = vmul.f32 %v1282, %v1280
  %v1284 = vmul.f32 %v1283, %v1282
  %v1285 = vmul.f32 0.5, %v1284
  %v1286 = vsub.f32 1.5, %v1285
  %v1287 = vmul.f32 %v1282, %v1286
  %vm1288 = vweird.f32 %v1280
  %vm1289 = vweird.f32 %v1282
  %vm1290 = vmor %vm1288, %vm1289
  %v1291 = vsel %vm1290, %v1282, %v1287
  %v1292 = vrsqrt.pop %v1281
  %v1293 = vmul.f32 %v1292, %v1281
  %v1294 = vmul.f32 %v1293, %v1292
  %v1295 = vmul.f32 0.5, %v1294
  %v1296 = vsub.f32 1.5, %v1295
  %v1297 = vmul.f32 %v1292, %v1296
  %vm1298 = vweird.f32 %v1281
  %vm1299 = vweird.f32 %v1292
  %vm1300 = vmor %vm1298, %vm1299
  %v1301 = vsel %vm1300, %v1292, %v1297
  %v1302 = vmul.f32 %v1268, %v1291
  %v1303 = vmul.f32 %v1269, %v1301
  %v1305 = vperm.slane %v1257, 0
  %v1307 = vmul.f32 %v1302, %v1305
  %v1308 = vmul.f32 %v1303, %v1305
  %v1310 = vperm.slane %v1259, 0
  %v1312 = vadd.f32 %v1307, %v1310
  %v1313 = vadd.f32 %v1308, %v1310
  %v1314 = vpack.c.bf16 %v1313, %v1312
  %s1315 = scalar_lea.vmem %s11, 16
  %v1316 = vld [vmem:[%s1315] sm:$0xf]
  %v1317 = vld [vmem:[%s1315 + $0x4] sm:$0xf]
  %v1318 = vld [vmem:[%s1315 + $0x8] sm:$0xf]
  %v1319 = vld [vmem:[%s1315 + $0xc] sm:$0xf]
  %s1320 = scalar_lea.vmem %s12, 1
  %v1321 = vld [vmem:[%s1320] sm:$0x1]
  %v1323 = vperm.slane %v1321, 0
  %v1329 = vunpack.c.l.b16 %v1316
  %v1330 = vunpack.c.l.b16 %v1317
  %v1331 = vunpack.c.l.b16 %v1318
  %v1332 = vunpack.c.l.b16 %v1319
  %v1333 = vpack.c.b16 %v1330, %v1329
  %v1334 = vpack.c.b16 %v1332, %v1331
  %v1338 = vsel %vm166, %v1314, 0
  %1340 = vmatpush.bf16.msra.mxu0 0
  %1341 = vmatpush.bf16.msra.mxu0 0
  %1342 = vmatpush.bf16.msra.mxu0 0
  %1343 = vmatpush.bf16.msra.mxu0 0
  %1344 = vmatpush.bf16.msra.mxu0 0
  %1345 = vmatpush.bf16.msra.mxu0 0
  %1346 = vmatpush.bf16.msra.mxu0 %v1334
  %1347 = vmatpush.bf16.msra.mxu0 %v1333
  %1348 = vmatmul.bf16.gmra.mxu0 %v1338
  %v1349 = vpop.f32.mrf.mxu0
  %v1350 = vadd.f32 %v1323, %v1349
  %v1351 = vpop.f32.mrf.mxu0
  %v1352 = vadd.f32 %v1323, %v1351
  %1353 = vdwg.mxu0
  %v1354 = vmul.f32 %v1350, %v1350
  %v1355 = vmul.f32 %v1352, %v1352
  %v1356 = vmul.f32 %v1350, %v1354
  %v1357 = vmul.f32 %v1352, %v1355
  %v1358 = vmul.f32 %v1356, 0.044715
  %v1359 = vmul.f32 %v1357, 0.044715
  %v1360 = vadd.f32 %v1350, %v1358
  %v1361 = vadd.f32 %v1352, %v1359
  %v1362 = vmul.f32 %v1360, 0.7978846
  %v1363 = vmul.f32 %v1361, 0.7978846
  %v1364 = vtanh.pop %v1362
  %v1365 = vtanh.pop %v1363
  %v1366 = vadd.f32 %v1364, 1.0
  %v1367 = vadd.f32 %v1365, 1.0
  %v1368 = vmul.f32 %v1366, 0.5
  %v1369 = vmul.f32 %v1367, 0.5
  %v1370 = vmul.f32 %v1350, %v1368
  %v1371 = vmul.f32 %v1352, %v1369
  %v1372 = vpack.c.bf16 %v1371, %v1370
  %s1373 = scalar_lea.vmem %s13, 32
  %v1374 = vld [vmem:[%s1373] sm:$0xf]
  %v1375 = vld [vmem:[%s1373 + $0x4] sm:$0xf]
  %v1376 = vld [vmem:[%s1373 + $0x8] sm:$0xf]
  %v1377 = vld [vmem:[%s1373 + $0xc] sm:$0xf]
  %v1378 = vld [vmem:[%s1373 + $0x10] sm:$0xf]
  %v1379 = vld [vmem:[%s1373 + $0x14] sm:$0xf]
  %v1380 = vld [vmem:[%s1373 + $0x18] sm:$0xf]
  %v1381 = vld [vmem:[%s1373 + $0x1c] sm:$0xf]
  %s1382 = scalar_lea.vmem %s14, 1
  %v1383 = vld [vmem:[%s1382] sm:$0x1]
  %v1385 = vperm.slane %v1383, 0
  %v1395 = vunpack.c.l.b16 %v1374
  %v1396 = vunpack.c.l.b16 %v1375
  %v1397 = vunpack.c.l.b16 %v1376
  %v1398 = vunpack.c.l.b16 %v1377
  %v1399 = vunpack.c.l.b16 %v1378
  %v1400 = vunpack.c.l.b16 %v1379
  %v1401 = vunpack.c.l.b16 %v1380
  %v1402 = vunpack.c.l.b16 %v1381
  %v1403 = vpack.c.b16 %v1396, %v1395
  %v1404 = vpack.c.b16 %v1398, %v1397
  %v1405 = vpack.c.b16 %v1400, %v1399
  %v1406 = vpack.c.b16 %v1402, %v1401
  %v1412 = vsel %vm779, %v1372, 0
  %1414 = vmatpush.bf16.msra.mxu0 0
  %1415 = vmatpush.bf16.msra.mxu0 0
  %1416 = vmatpush.bf16.msra.mxu0 0
  %1417 = vmatpush.bf16.msra.mxu0 0
  %1418 = vmatpush.bf16.msra.mxu0 %v1406
  %1419 = vmatpush.bf16.msra.mxu0 %v1405
  %1420 = vmatpush.bf16.msra.mxu0 %v1404
  %1421 = vmatpush.bf16.msra.mxu0 %v1403
  %1422 = vmatmul.bf16.gmra.mxu0 %v1412
  %v1423 = vpop.f32.mrf.mxu0
  %v1424 = vadd.f32 %v1385, %v1423
  %v1425 = vpop.f32.mrf.mxu0
  %v1426 = vadd.f32 %v1385, %v1425
  %1427 = vdwg.mxu0
  %v1428 = vadd.f32 %v1312, %v1424
  %v1429 = vadd.f32 %v1313, %v1426
  %s1430 = scalar_lea.vmem %s15, 1
  %v1431 = vld [vmem:[%s1430] sm:$0x1]
  %s1432 = scalar_lea.vmem %s16, 1
  %v1433 = vld [vmem:[%s1432] sm:$0x1]
  %v1434 = vsel %vm166, %v1428, 0.0
  %1435 = vadd.xlane.f32.xlu0 %v1434
  %v1436 = vpop.xlane.xlu0 %1435
  %v1437 = vsel %vm166, %v1429, 0.0
  %1438 = vadd.xlane.f32.xlu0 %v1437
  %v1439 = vpop.xlane.xlu0 %1438
  %v1440 = vmul.f32 %v1436, %v179
  %v1441 = vmul.f32 %v1439, %v179
  %v1442 = vsub.f32 %v1428, %v1440
  %v1443 = vsub.f32 %v1429, %v1441
  %v1444 = vmul.f32 %v1442, %v1442
  %v1445 = vmul.f32 %v1443, %v1443
  %v1446 = vsel %vm166, %v1444, 0.0
  %1447 = vadd.xlane.f32.xlu0 %v1446
  %v1448 = vpop.xlane.xlu0 %1447
  %v1449 = vsel %vm166, %v1445, 0.0
  %1450 = vadd.xlane.f32.xlu0 %v1449
  %v1451 = vpop.xlane.xlu0 %1450
  %v1452 = vmul.f32 %v1448, %v179
  %v1453 = vmul.f32 %v1451, %v179
  %v1454 = vadd.f32 %v1452, 1e-07
  %v1455 = vadd.f32 %v1453, 1e-07
  %v1456 = vrsqrt.pop %v1454
  %v1457 = vmul.f32 %v1456, %v1454
  %v1458 = vmul.f32 %v1457, %v1456
  %v1459 = vmul.f32 0.5, %v1458
  %v1460 = vsub.f32 1.5, %v1459
  %v1461 = vmul.f32 %v1456, %v1460
  %vm1462 = vweird.f32 %v1454
  %vm1463 = vweird.f32 %v1456
  %vm1464 = vmor %vm1462, %vm1463
  %v1465 = vsel %vm1464, %v1456, %v1461
  %v1466 = vrsqrt.pop %v1455
  %v1467 = vmul.f32 %v1466, %v1455
  %v1468 = vmul.f32 %v1467, %v1466
  %v1469 = vmul.f32 0.5, %v1468
  %v1470 = vsub.f32 1.5, %v1469
  %v1471 = vmul.f32 %v1466, %v1470
  %vm1472 = vweird.f32 %v1455
  %vm1473 = vweird.f32 %v1466
  %vm1474 = vmor %vm1472, %vm1473
  %v1475 = vsel %vm1474, %v1466, %v1471
  %v1476 = vmul.f32 %v1442, %v1465
  %v1477 = vmul.f32 %v1443, %v1475
  %v1479 = vperm.slane %v1431, 0
  %v1481 = vmul.f32 %v1476, %v1479
  %v1482 = vmul.f32 %v1477, %v1479
  %v1484 = vperm.slane %v1433, 0
  %v1486 = vadd.f32 %v1481, %v1484
  %v1487 = vadd.f32 %v1482, %v1484
  %v1489 = vrot.slane %v1487, 7
  %vm1491 = vcmask 1040384
  %v1492 = vsel %vm1491, %v1486, %v1489
  %v1493 = vpack.c.bf16 %v1492, %v1492
  %v1494 = vld [vmem:[%s17] sm:$0xf]
  %v1495 = vld [vmem:[%s17 + $0x4] sm:$0xf]
  %v1496 = vld [vmem:[%s17 + $0x8] sm:$0xf]
  %v1497 = vld [vmem:[%s17 + $0xc] sm:$0xf]
  %v1498 = vld [vmem:[%s18] sm:$0x1]
  %v1500 = vperm.slane %v1498, 0
  %v1506 = vunpack.c.l.b16 %v1494
  %v1507 = vunpack.c.l.b16 %v1495
  %v1508 = vunpack.c.l.b16 %v1496
  %v1509 = vunpack.c.l.b16 %v1497
  %v1510 = vpack.c.b16 %v1507, %v1506
  %v1511 = vpack.c.b16 %v1509, %v1508
  %v1515 = vsel %vm166, %v1493, 0
  %1517 = vmatpush.bf16.msra.mxu0 0
  %1518 = vmatpush.bf16.msra.mxu0 0
  %1519 = vmatpush.bf16.msra.mxu0 0
  %1520 = vmatpush.bf16.msra.mxu0 0
  %1521 = vmatpush.bf16.msra.mxu0 0
  %1522 = vmatpush.bf16.msra.mxu0 0
  %1523 = vmatpush.bf16.msra.mxu0 %v1511
  %1524 = vmatpush.bf16.msra.mxu0 %v1510
  %1525 = vmatmul.bf16.gmra.mxu0 %v1515
  %v1526 = vpop.f32.mrf.mxu0
  %v1527 = vadd.f32 %v1500, %v1526
  %v1528 = vpop.f32.mrf.mxu0
  %1529 = vdwg.mxu0
  %v1530 = vtanh.pop %v1527
  %v1531 = vld [vmem:[%s19] sm:$0x1]
  %v1533 = vperm.slane %v1531, 0
  %v1535 = vmul.f32 %v1530, %v1533
  %vm1536 = vcmask 254976
  %v1537 = vsel %vm1536, %v1535, 0.0
  %1538 = vadd.xlane.f32.xlu0 %v1537
  %v1539 = vpop.xlane.xlu0 %1538
  %v1540 = vld [vmem:[#allocation2] sm:$0x1]
  %v1542 = vperm.slane %v1540, 0
  %v1544 = vadd.f32 %v1539, %v1542
  %vm1545 = vcmask 1024
  %1546 = vst.msk [vmem:[%s21] sm:$0x3] %vm1545, %v1544
  // Predicated region
  $region86: #{forward.1} parent=0 // pred_check
    _
  $region87: #{forward.1} parent=0 // pred_check_branch
    %1548 = sbr.rel (0) target = $region89
  $region88: #{forward.1} parent=0 // pred_region
    _
  $region89: #{forward.1} parent=0 // pred_fallthru
    _
  // Predicated region
  $region90: #{forward.1} parent=0 // pred_check
    _
  $region91: #{forward.1} parent=0 // pred_check_branch
    %1550 = sbr.rel (0) target = $region93
  $region92: #{forward.1} parent=0 // pred_region
    _
  $region93: #{forward.1} parent=0 // pred_fallthru
    _

</llo_original>
